<compile_context>
chip_gen: v5e
topology: v5e:2x2
jax: 0.10.0
libtpu: 0.0.40
codegen_flags: <defaults>
</compile_context>

<pallas_src>
import functools

import jax
import jax.numpy as jnp
from jax import lax
from jax.experimental import pallas as pl
from jax.experimental.pallas import tpu as pltpu


# Per-config roles: (birth_offd, birth_diag, death_offd, death_diag)
#   g=0 min(x,z) imm=1 : birth = [[0,x.T],[x,min]]   death = [[0,x.T],[x,z]]
#   g=1 max(x,z) imm=1 : birth = [[0,z.T],[z,z]]     death = [[0,max.T],[max,z]]
#   g=2 min(z,x) imm=2 : birth = [[0,z.T],[z,min]]   death = [[0,z.T],[z,z]]
#   g=3 max(z,x) imm=2 : birth = [[0,z.T],[z,x]]     death = [[0,max.T],[max,x]]
_ROLES = (('X', 'MIN', 'X', 'Z'),
          ('Z', 'Z', 'MAX', 'Z'),
          ('Z', 'MIN', 'Z', 'Z'),
          ('Z', 'X', 'MAX', 'X'))
_G = len(_ROLES)


def _role_val(role, xv, zv):
    # compile-time (Python) role selection -- at most one VPU op per role
    if role == 'X':
        return xv
    if role == 'Z':
        return zv
    if role == 'MIN':
        return jnp.minimum(xv, zv)
    return jnp.maximum(xv, zv)


def _apply_pow(diff, p):
    if p == 1.0:
        return diff
    if p == 2.0:
        return diff * diff
    if float(p).is_integer():
        return diff ** int(p)        # integer_pow: stays on the VPU
    return diff ** p                 # fractional p > 0: EUP exp/log path


def _rtd_loss_kernel(p, N, CP, xz_ref, idx_ref, out_ref):
    Q = 2 * _G                       # 8 gathers: (birth, death) per config
    QCP = Q * CP

    xz = xz_ref[...]                 # (2N, N) f32: rows [0:N) = x, [N:2N) = z
    r2n = idx_ref[0:1, :]            # (1, Q*CP) rows in the virtual 2Nx2N matrix
    c2n = idx_ref[1:2, :]            # (1, Q*CP) cols

    # Quadrant remap into the NxN blocks.  In the zero quadrant (r<N, c<N) rr is
    # negative -> all-zero one-hot row mask -> gathered value 0, which is exactly
    # the [[0, .],[., .]] block, so no extra masking is required.
    r_ge = r2n >= N
    c_ge = c2n >= N
    rr = jnp.where(r_ge, r2n - N, c2n - N)
    cc = jnp.where(r_ge, jnp.where(c_ge, c2n - N, c2n), r2n)
    is_diag = jnp.logical_and(r_ge, c_ge)                        # (1, Q*CP)

    sub_iota = lax.broadcasted_iota(jnp.int32, (N, QCP), 0)
    oh_r = (sub_iota == rr).astype(jnp.float32)                  # (N, Q*CP)
    oh_c = (sub_iota == cc).astype(jnp.float32)                  # (N, Q*CP)

    # Single fused gather matmul: t[k, i] = [x; z][k, cc[i]].
    t = jnp.dot(xz, oh_c, preferred_element_type=jnp.float32,
                precision=lax.Precision.HIGHEST)                 # (2N, Q*CP)
    xv = jnp.sum(t[0:N, :] * oh_r, axis=0, keepdims=True)        # (1, Q*CP)
    zv = jnp.sum(t[N:2 * N, :] * oh_r, axis=0, keepdims=True)    # (1, Q*CP)

    acc = jnp.zeros((1, CP), jnp.float32)
    for g in range(_G):                                          # Python-unrolled
        b_offd, b_diag, d_offd, d_diag = _ROLES[g]

        def quad_val(q, offd_role, diag_role):
            sl = slice(q * CP, (q + 1) * CP)                     # lane-tile aligned
            xq, zq = xv[:, sl], zv[:, sl]
            offd_v = _role_val(offd_role, xq, zq)
            if diag_role == offd_role:
                return offd_v
            return jnp.where(is_diag[:, sl],
                             _role_val(diag_role, xq, zq), offd_v)

        birth = quad_val(2 * g, b_offd, b_diag)
        death = quad_val(2 * g + 1, d_offd, d_diag)
        acc = acc + _apply_pow(jnp.abs(death - birth), p)

    out_ref[...] = acc               # (1, CP): padded lanes contribute 0


def minmax_rtd_loss(x_dist, z_dist, brow, bcol, drow, dcol, *, p=1.0):
    """MinMaxRTDLoss.forward (is_sym=True, dim=1) given precomputed critical indices.

    brow/bcol/drow/dcol: (4, C) int32 indices into the virtual 2Nx2N RTD matrices
    for configs [min(x,z,imm=1), max(x,z,imm=1), min(z,x,imm=2), max(z,x,imm=2)].
    """
    assert p > 0.0, "lp must be positive"
    N = x_dist.shape[0]
    G, C = brow.shape
    assert G == _G
    CP = ((C + 127) // 128) * 128          # lane-dense padded cardinality

    def pad1(a):
        return jnp.pad(a.astype(jnp.int32), (0, CP - C))

    # (2, 8*CP): row 0 = virtual-row indices, row 1 = virtual-col indices, with
    # gathers [birth_g, death_g for g in 0..3] along lanes (CP lanes each).
    # Padded lanes carry (0, 0) -> zero quadrant -> contribute 0 to the loss.
    rows, cols = [], []
    for g in range(G):
        rows += [pad1(brow[g]), pad1(drow[g])]
        cols += [pad1(bcol[g]), pad1(dcol[g])]
    idx = jnp.stack([jnp.concatenate(rows), jnp.concatenate(cols)], axis=0)

    # Stacked distance matrices: one (2N, N) matmul LHS, fetched once.
    xz = jnp.concatenate([x_dist.astype(jnp.float32),
                          z_dist.astype(jnp.float32)], axis=0)

    kernel = functools.partial(_rtd_loss_kernel, float(p), N, CP)

    # Gridless call: whole arrays VMEM-resident exactly once (no pipelining /
    # double-buffering), which also keeps the v7x (64 MiB VMEM) footprint at
    # roughly (2N*N + 3*N*8*CP + 2N*8*CP) * 4 bytes.
    partial_lanes = pl.pallas_call(
        kernel,
        out_shape=jax.ShapeDtypeStruct((1, CP), jnp.float32),
        in_specs=[pl.BlockSpec(memory_space=pltpu.MemorySpace.VMEM),
                  pl.BlockSpec(memory_space=pltpu.MemorySpace.VMEM)],
        out_specs=pl.BlockSpec(memory_space=pltpu.MemorySpace.VMEM),
    )(xz, idx)

    # loss = (loss_xz + loss_zx) / 2  == sum of all per-lane partials / 2
    return jnp.sum(partial_lanes) / 2.0


def _reference_loss(x_dist, z_dist, brow, bcol, drow, dcol, p):
    """Pure-JAX mirror of the PyTorch forward (with the same synthetic indices)."""
    N = x_dist.shape[0]
    Z = jnp.zeros((N, N), jnp.float32)
    configs = [('min', 1, x_dist, z_dist),
               ('max', 1, x_dist, z_dist),
               ('min', 2, z_dist, x_dist),
               ('max', 2, z_dist, x_dist)]
    total = jnp.float32(0.0)
    for g, (mode, imm, d1, d2) in enumerate(configs):
        if mode == 'min':
            DX = jnp.block([[Z, d1.T], [d1, jnp.minimum(d1, d2)]])
            DX2 = jnp.block([[Z, d1.T], [d1, d2]]) if imm == 1 else \
                  jnp.block([[Z, d1.T], [d1, d1]])
            birth_mat, death_mat = DX, DX2
        else:
            d12 = jnp.maximum(d1, d2)
            DX = jnp.block([[Z, d12.T], [d12, d2]])
            DX2 = jnp.block([[Z, d2.T], [d2, d2]]) if imm == 1 else \
                  jnp.block([[Z, d1.T], [d1, d2]])
            birth_mat, death_mat = DX2, DX
        births = birth_mat[brow[g], bcol[g]]
        deaths = death_mat[drow[g], dcol[g]]
        total = total + jnp.sum(jnp.abs(deaths - births) ** p)
    return total / 2.0


if __name__ == "__main__":
    N, D, C = 16, 8, 50     # N points per cloud, feature dim, cardinality
    P = 1.0                 # lp
    G = 4                   # 4 RTD calls: min/max x->z, min/max z->x

    key = jax.random.PRNGKey(0)
    kx, kz, kb1, kb2, kd1, kd2 = jax.random.split(key, 6)

    def pdist(a):
        sq = jnp.sum((a[:, None, :] - a[None, :, :]) ** 2, axis=-1)
        return jnp.sqrt(jnp.maximum(sq, 0.0))

    x_dist = pdist(jax.random.normal(kx, (N, D), jnp.float32))
    z_dist = pdist(jax.random.normal(kz, (N, D), jnp.float32))

    # TODO(synk): deterministic synthetic stand-in for ripser critical-simplex indices.
    brow = jax.random.randint(kb1, (G, C), 0, 2 * N, dtype=jnp.int32)
    bcol = jax.random.randint(kb2, (G, C), 0, 2 * N, dtype=jnp.int32)
    drow = jax.random.randint(kd1, (G, C), 0, 2 * N, dtype=jnp.int32)
    dcol = jax.random.randint(kd2, (G, C), 0, 2 * N, dtype=jnp.int32)

    loss = minmax_rtd_loss(x_dist, z_dist, brow, bcol, drow, dcol, p=P)
    loss = jax.block_until_ready(loss)

    ref = _reference_loss(x_dist, z_dist, brow, bcol, drow, dcol, P)
    assert jnp.allclose(loss, ref, rtol=1e-4, atol=1e-4), (float(loss), float(ref))
    print("KERNEL_OK")
</pallas_src>

<mosaic_0001>
module attributes {stable_mosaic.version = 11 : i64} {
  func.func @_rtd_loss_kernel(%arg0: memref<32x16xf32, #tpu.memory_space<vmem>>, %arg1: memref<2x1024xi32, #tpu.memory_space<vmem>>, %arg2: memref<1x128xf32, #tpu.memory_space<vmem>>) attributes {dimension_semantics = [], scalar_prefetch = 0 : i64, scratch_operands = 0 : i64, tpu.core_type = #tpu.core_type<tc>} {
    %c0 = arith.constant 0 : index
    %c0_0 = arith.constant 0 : index
    %0 = vector.load %arg0[%c0, %c0_0] : memref<32x16xf32, #tpu.memory_space<vmem>>, vector<32x16xf32>
    %c0_1 = arith.constant 0 : index
    %c0_2 = arith.constant 0 : index
    %1 = vector.load %arg1[%c0_1, %c0_2] : memref<2x1024xi32, #tpu.memory_space<vmem>>, vector<1x1024xi32>
    %c1 = arith.constant 1 : index
    %c0_3 = arith.constant 0 : index
    %2 = vector.load %arg1[%c1, %c0_3] : memref<2x1024xi32, #tpu.memory_space<vmem>>, vector<1x1024xi32>
    %c16_i32 = arith.constant 16 : i32
    %3 = vector.broadcast %c16_i32 : i32 to vector<1x1024xi32>
    %4 = arith.cmpi sge, %1, %3 : vector<1x1024xi32>
    %c16_i32_4 = arith.constant 16 : i32
    %5 = vector.broadcast %c16_i32_4 : i32 to vector<1x1024xi32>
    %6 = arith.cmpi sge, %2, %5 : vector<1x1024xi32>
    %c16_i32_5 = arith.constant 16 : i32
    %7 = vector.broadcast %c16_i32_5 : i32 to vector<1x1024xi32>
    %8 = arith.subi %1, %7 : vector<1x1024xi32>
    %c16_i32_6 = arith.constant 16 : i32
    %9 = vector.broadcast %c16_i32_6 : i32 to vector<1x1024xi32>
    %10 = arith.subi %2, %9 : vector<1x1024xi32>
    %11 = arith.select %4, %8, %10 : vector<1x1024xi1>, vector<1x1024xi32>
    %c16_i32_7 = arith.constant 16 : i32
    %12 = vector.broadcast %c16_i32_7 : i32 to vector<1x1024xi32>
    %13 = arith.subi %2, %12 : vector<1x1024xi32>
    %14 = arith.select %6, %13, %2 : vector<1x1024xi1>, vector<1x1024xi32>
    %15 = arith.select %4, %14, %1 : vector<1x1024xi1>, vector<1x1024xi32>
    %16 = arith.andi %4, %6 : vector<1x1024xi1>
    %17 = tpu.iota {dimensions = array<i32: 0>} : vector<16x1024xi32>
    %18 = vector.broadcast %11 : vector<1x1024xi32> to vector<16x1024xi32>
    %19 = arith.cmpi eq, %17, %18 : vector<16x1024xi32>
    %20 = arith.extui %19 : vector<16x1024xi1> to vector<16x1024xi32>
    %21 = arith.sitofp %20 : vector<16x1024xi32> to vector<16x1024xf32>
    %22 = vector.broadcast %15 : vector<1x1024xi32> to vector<16x1024xi32>
    %23 = arith.cmpi eq, %17, %22 : vector<16x1024xi32>
    %24 = arith.extui %23 : vector<16x1024xi1> to vector<16x1024xi32>
    %25 = arith.sitofp %24 : vector<16x1024xi32> to vector<16x1024xf32>
    %cst = arith.constant dense<0.000000e+00> : vector<32x1024xf32>
    %26 = tpu.matmul %0, %25, %cst {dimension_numbers = #tpu.dot_dimension_numbers<[1], [0], [0], [1], [0, 0, 1, 1], [], []>, precision = #tpu.contract_precision<fp32>} : vector<32x16xf32>, vector<16x1024xf32>, vector<32x1024xf32> -> vector<32x1024xf32>
    %27 = vector.extract_strided_slice %26 {offsets = [0, 0], sizes = [16, 1024], strides = [1, 1]} : vector<32x1024xf32> to vector<16x1024xf32>
    %28 = arith.mulf %27, %21 : vector<16x1024xf32>
    %cst_8 = arith.constant dense<0.000000e+00> : vector<1024xf32>
    %29 = vector.multi_reduction <add>, %28, %cst_8 [0] : vector<16x1024xf32> to vector<1024xf32>
    %30 = vector.shape_cast %29 : vector<1024xf32> to vector<1x1024xf32>
    %31 = vector.extract_strided_slice %26 {offsets = [16, 0], sizes = [16, 1024], strides = [1, 1]} : vector<32x1024xf32> to vector<16x1024xf32>
    %32 = arith.mulf %31, %21 : vector<16x1024xf32>
    %cst_9 = arith.constant dense<0.000000e+00> : vector<1024xf32>
    %33 = vector.multi_reduction <add>, %32, %cst_9 [0] : vector<16x1024xf32> to vector<1024xf32>
    %34 = vector.shape_cast %33 : vector<1024xf32> to vector<1x1024xf32>
    %cst_10 = arith.constant 0.000000e+00 : f32
    %35 = vector.broadcast %cst_10 : f32 to vector<1x128xf32>
    %36 = vector.extract_strided_slice %30 {offsets = [0, 0], sizes = [1, 128], strides = [1, 1]} : vector<1x1024xf32> to vector<1x128xf32>
    %37 = vector.extract_strided_slice %34 {offsets = [0, 0], sizes = [1, 128], strides = [1, 1]} : vector<1x1024xf32> to vector<1x128xf32>
    %38 = vector.extract_strided_slice %16 {offsets = [0, 0], sizes = [1, 128], strides = [1, 1]} : vector<1x1024xi1> to vector<1x128xi1>
    %39 = arith.minimumf %36, %37 : vector<1x128xf32>
    %40 = arith.select %38, %39, %36 : vector<1x128xi1>, vector<1x128xf32>
    %41 = vector.extract_strided_slice %30 {offsets = [0, 128], sizes = [1, 128], strides = [1, 1]} : vector<1x1024xf32> to vector<1x128xf32>
    %42 = vector.extract_strided_slice %34 {offsets = [0, 128], sizes = [1, 128], strides = [1, 1]} : vector<1x1024xf32> to vector<1x128xf32>
    %43 = vector.extract_strided_slice %16 {offsets = [0, 128], sizes = [1, 128], strides = [1, 1]} : vector<1x1024xi1> to vector<1x128xi1>
    %44 = arith.select %43, %42, %41 : vector<1x128xi1>, vector<1x128xf32>
    %45 = arith.subf %44, %40 : vector<1x128xf32>
    %46 = math.absf %45 : vector<1x128xf32>
    %47 = arith.addf %35, %46 : vector<1x128xf32>
    %48 = vector.extract_strided_slice %34 {offsets = [0, 256], sizes = [1, 128], strides = [1, 1]} : vector<1x1024xf32> to vector<1x128xf32>
    %49 = vector.extract_strided_slice %30 {offsets = [0, 384], sizes = [1, 128], strides = [1, 1]} : vector<1x1024xf32> to vector<1x128xf32>
    %50 = vector.extract_strided_slice %34 {offsets = [0, 384], sizes = [1, 128], strides = [1, 1]} : vector<1x1024xf32> to vector<1x128xf32>
    %51 = arith.maximumf %49, %50 : vector<1x128xf32>
    %52 = vector.extract_strided_slice %16 {offsets = [0, 384], sizes = [1, 128], strides = [1, 1]} : vector<1x1024xi1> to vector<1x128xi1>
    %53 = arith.select %52, %50, %51 : vector<1x128xi1>, vector<1x128xf32>
    %54 = arith.subf %53, %48 : vector<1x128xf32>
    %55 = math.absf %54 : vector<1x128xf32>
    %56 = arith.addf %47, %55 : vector<1x128xf32>
    %57 = vector.extract_strided_slice %30 {offsets = [0, 512], sizes = [1, 128], strides = [1, 1]} : vector<1x1024xf32> to vector<1x128xf32>
    %58 = vector.extract_strided_slice %34 {offsets = [0, 512], sizes = [1, 128], strides = [1, 1]} : vector<1x1024xf32> to vector<1x128xf32>
    %59 = vector.extract_strided_slice %16 {offsets = [0, 512], sizes = [1, 128], strides = [1, 1]} : vector<1x1024xi1> to vector<1x128xi1>
    %60 = arith.minimumf %57, %58 : vector<1x128xf32>
    %61 = arith.select %59, %60, %58 : vector<1x128xi1>, vector<1x128xf32>
    %62 = vector.extract_strided_slice %34 {offsets = [0, 640], sizes = [1, 128], strides = [1, 1]} : vector<1x1024xf32> to vector<1x128xf32>
    %63 = arith.subf %62, %61 : vector<1x128xf32>
    %64 = math.absf %63 : vector<1x128xf32>
    %65 = arith.addf %56, %64 : vector<1x128xf32>
    %66 = vector.extract_strided_slice %30 {offsets = [0, 768], sizes = [1, 128], strides = [1, 1]} : vector<1x1024xf32> to vector<1x128xf32>
    %67 = vector.extract_strided_slice %34 {offsets = [0, 768], sizes = [1, 128], strides = [1, 1]} : vector<1x1024xf32> to vector<1x128xf32>
    %68 = vector.extract_strided_slice %16 {offsets = [0, 768], sizes = [1, 128], strides = [1, 1]} : vector<1x1024xi1> to vector<1x128xi1>
    %69 = arith.select %68, %66, %67 : vector<1x128xi1>, vector<1x128xf32>
    %70 = vector.extract_strided_slice %30 {offsets = [0, 896], sizes = [1, 128], strides = [1, 1]} : vector<1x1024xf32> to vector<1x128xf32>
    %71 = vector.extract_strided_slice %34 {offsets = [0, 896], sizes = [1, 128], strides = [1, 1]} : vector<1x1024xf32> to vector<1x128xf32>
    %72 = arith.maximumf %70, %71 : vector<1x128xf32>
    %73 = vector.extract_strided_slice %16 {offsets = [0, 896], sizes = [1, 128], strides = [1, 1]} : vector<1x1024xi1> to vector<1x128xi1>
    %74 = arith.select %73, %70, %72 : vector<1x128xi1>, vector<1x128xf32>
    %75 = arith.subf %74, %69 : vector<1x128xf32>
    %76 = math.absf %75 : vector<1x128xf32>
    %77 = arith.addf %65, %76 : vector<1x128xf32>
    %c0_11 = arith.constant 0 : index
    %c0_12 = arith.constant 0 : index
    %78 = vector.load %arg2[%c0_11, %c0_12] : memref<1x128xf32, #tpu.memory_space<vmem>>, vector<1x128xf32>
    tpu.vector_store %arg2[%c0_11, %c0_12], %77 {strides = array<i32>} : memref<1x128xf32, #tpu.memory_space<vmem>>, vector<1x128xf32>,
    return
  }
}

</mosaic_0001>

<llo_original>
// kernel: tpu_custom_call.1
$region0: #{tpu_custom_call.1}
  #allocation0 [shape = 'u32[]', space=smem, size = 0x4, offset = 0x4, fixed_abs, tag = 'smem constant byte address 0x4 - core index']
  #allocation1 [shape = 'u32[72,128]{1,0:T(1,128)}', space=vmem, size = 0x9000, scoped, tag = 'internal scratch']
  %s0 = inlined_call_operand.vmem [shape: f32[32,16], index: 0, kind: input, shape index: {}]
  %s1 = inlined_call_operand.vmem [shape: s32[2,1024], index: 1, kind: input, shape index: {}]
  %s2 = inlined_call_operand.hbm [shape: f32[1,128], index: 2, kind: output, shape index: {}]
  %s3 = sld [smem:[#allocation0]]
  $region18: #{tpu_custom_call.1} parent=0
    _
  %s5 = ssub.s32 1, %s3
  %s6 = scalar_select 0, %s5, %s3
  $region1: #{tpu_custom_call.1} parent=0
    #allocation2 [shape = 'u8[512]{0}', space=vmem, size = 0x400, scoped, tag = 'output window, operand 0, single buffered']
    #allocation3 [shape = 's32[1]{0}', space=sflag, size = 0x4, scoped, tag = 'scoped memory for tpu_custom_call.1']
    %7 = vsyncpa [#allocation3], 0
    // Predicated region
    $region2: #{tpu_custom_call.1} parent=1 // pred_check
      _
    $region3: #{tpu_custom_call.1} parent=1 // pred_check_branch
      %9 = sbr.rel (0) target = $region5
    $region4: #{tpu_custom_call.1} parent=1 // pred_region
      _
    $region5: #{tpu_custom_call.1} parent=1 // pred_fallthru
      _
    // Predicated region
    $region6: #{tpu_custom_call.1} parent=1 // pred_check
      _
    $region7: #{tpu_custom_call.1} parent=1 // pred_check_branch
      %11 = sbr.rel (0) target = $region9
    $region8: #{tpu_custom_call.1} parent=1 // pred_region
      _
    $region9: #{tpu_custom_call.1} parent=1 // pred_fallthru
      _
    %v12 = vld [vmem:[%s0] sm:$0xff]
    %v13 = vld [vmem:[%s0 + $0x8] sm:$0xff]
    %v14 = vld [vmem:[%s0 + $0x10] sm:$0xff]
    %v15 = vld [vmem:[%s0 + $0x18] sm:$0xff]
    %v16 = vld [vmem:[%s1] ss:$2 sm:$0xff]
    %s17 = scalar_lea.vmem %s1, 1
    %v18 = vld [vmem:[%s17] ss:$2 sm:$0xff]
    %vm19 = vcmp.ge.s32.totalorder %v16, 16
    %vm20 = vcmp.ge.s32.totalorder %v18, 16
    %v21 = vsub.s32 %v16, 16
    %v22 = vsub.s32 %v18, 16
    %v23 = vsel %vm19, %v21, %v22
    %v24 = vsel %vm20, %v22, %v18
    %v25 = vsel %vm19, %v24, %v16
    %vm26 = vmand %vm19, %vm20
    %v27 = vlaneseq
    %v28 = vshrl.u32 %v27, 7
    %v29 = vadd.s32 %v28, 8
    %v30 = vperm.slane %v23, 0
    %v31 = vperm.slane %v23, 1
    %v32 = vperm.slane %v23, 2
    %v33 = vperm.slane %v23, 3
    %v34 = vperm.slane %v23, 4
    %v35 = vperm.slane %v23, 5
    %v36 = vperm.slane %v23, 6
    %v37 = vperm.slane %v23, 7
    %vm38 = vcmp.eq.s32.totalorder %v28, %v30
    %vm39 = vcmp.eq.s32.totalorder %v28, %v31
    %vm40 = vcmp.eq.s32.totalorder %v28, %v32
    %vm41 = vcmp.eq.s32.totalorder %v28, %v33
    %vm42 = vcmp.eq.s32.totalorder %v28, %v34
    %vm43 = vcmp.eq.s32.totalorder %v28, %v35
    %vm44 = vcmp.eq.s32.totalorder %v28, %v36
    %vm45 = vcmp.eq.s32.totalorder %v28, %v37
    %vm46 = vcmp.eq.s32.totalorder %v29, %v30
    %vm47 = vcmp.eq.s32.totalorder %v29, %v31
    %vm48 = vcmp.eq.s32.totalorder %v29, %v32
    %vm49 = vcmp.eq.s32.totalorder %v29, %v33
    %vm50 = vcmp.eq.s32.totalorder %v29, %v34
    %vm51 = vcmp.eq.s32.totalorder %v29, %v35
    %vm52 = vcmp.eq.s32.totalorder %v29, %v36
    %vm53 = vcmp.eq.s32.totalorder %v29, %v37
    %v54 = vsel %vm38, 1, 0
    %v55 = vsel %vm39, 1, 0
    %v56 = vsel %vm40, 1, 0
    %v57 = vsel %vm41, 1, 0
    %v58 = vsel %vm42, 1, 0
    %v59 = vsel %vm43, 1, 0
    %v60 = vsel %vm44, 1, 0
    %v61 = vsel %vm45, 1, 0
    %v62 = vsel %vm46, 1, 0
    %v63 = vsel %vm47, 1, 0
    %v64 = vsel %vm48, 1, 0
    %v65 = vsel %vm49, 1, 0
    %v66 = vsel %vm50, 1, 0
    %v67 = vsel %vm51, 1, 0
    %v68 = vsel %vm52, 1, 0
    %v69 = vsel %vm53, 1, 0
    %v70 = vcvt.s32.f32 %v54
    %v71 = vcvt.s32.f32 %v55
    %v72 = vcvt.s32.f32 %v56
    %v73 = vcvt.s32.f32 %v57
    %v74 = vcvt.s32.f32 %v58
    %v75 = vcvt.s32.f32 %v59
    %v76 = vcvt.s32.f32 %v60
    %v77 = vcvt.s32.f32 %v61
    %v78 = vcvt.s32.f32 %v62
    %v79 = vcvt.s32.f32 %v63
    %v80 = vcvt.s32.f32 %v64
    %v81 = vcvt.s32.f32 %v65
    %v82 = vcvt.s32.f32 %v66
    %v83 = vcvt.s32.f32 %v67
    %v84 = vcvt.s32.f32 %v68
    %v85 = vcvt.s32.f32 %v69
    %v86 = vperm.slane %v25, 0
    %v87 = vperm.slane %v25, 1
    %v88 = vperm.slane %v25, 2
    %v89 = vperm.slane %v25, 3
    %v90 = vperm.slane %v25, 4
    %v91 = vperm.slane %v25, 5
    %v92 = vperm.slane %v25, 6
    %v93 = vperm.slane %v25, 7
    %vm94 = vcmp.eq.s32.totalorder %v28, %v86
    %vm95 = vcmp.eq.s32.totalorder %v28, %v87
    %vm96 = vcmp.eq.s32.totalorder %v28, %v88
    %vm97 = vcmp.eq.s32.totalorder %v28, %v89
    %vm98 = vcmp.eq.s32.totalorder %v28, %v90
    %vm99 = vcmp.eq.s32.totalorder %v28, %v91
    %vm100 = vcmp.eq.s32.totalorder %v28, %v92
    %vm101 = vcmp.eq.s32.totalorder %v28, %v93
    %vm102 = vcmp.eq.s32.totalorder %v29, %v86
    %vm103 = vcmp.eq.s32.totalorder %v29, %v87
    %vm104 = vcmp.eq.s32.totalorder %v29, %v88
    %vm105 = vcmp.eq.s32.totalorder %v29, %v89
    %vm106 = vcmp.eq.s32.totalorder %v29, %v90
    %vm107 = vcmp.eq.s32.totalorder %v29, %v91
    %vm108 = vcmp.eq.s32.totalorder %v29, %v92
    %vm109 = vcmp.eq.s32.totalorder %v29, %v93
    %v110 = vsel %vm94, 1, 0
    %v111 = vsel %vm95, 1, 0
    %v112 = vsel %vm96, 1, 0
    %v113 = vsel %vm97, 1, 0
    %v114 = vsel %vm98, 1, 0
    %v115 = vsel %vm99, 1, 0
    %v116 = vsel %vm100, 1, 0
    %v117 = vsel %vm101, 1, 0
    %v118 = vsel %vm102, 1, 0
    %v119 = vsel %vm103, 1, 0
    %v120 = vsel %vm104, 1, 0
    %v121 = vsel %vm105, 1, 0
    %v122 = vsel %vm106, 1, 0
    %v123 = vsel %vm107, 1, 0
    %v124 = vsel %vm108, 1, 0
    %v125 = vsel %vm109, 1, 0
    %v126 = vcvt.s32.f32 %v110
    %v127 = vcvt.s32.f32 %v111
    %v128 = vcvt.s32.f32 %v112
    %v129 = vcvt.s32.f32 %v113
    %v130 = vcvt.s32.f32 %v114
    %v131 = vcvt.s32.f32 %v115
    %v132 = vcvt.s32.f32 %v116
    %v133 = vcvt.s32.f32 %v117
    %v134 = vcvt.s32.f32 %v118
    %v135 = vcvt.s32.f32 %v119
    %v136 = vcvt.s32.f32 %v120
    %v137 = vcvt.s32.f32 %v121
    %v138 = vcvt.s32.f32 %v122
    %v139 = vcvt.s32.f32 %v123
    %v140 = vcvt.s32.f32 %v124
    %v141 = vcvt.s32.f32 %v125
    %vm142 = vcmask 130048
    %v144 = vsel %vm142, %v12, 0
    %v147 = vsel %vm142, %v13, 0
    %v150 = vsel %vm142, %v14, 0
    %v153 = vsel %vm142, %v15, 0
    %155 = vmatpush.msra.mxu0 0.0
    %156 = vmatpush.msra.mxu0 0.0
    %157 = vmatpush.msra.mxu0 0.0
    %158 = vmatpush.msra.mxu0 0.0
    %159 = vmatpush.msra.mxu0 0.0
    %160 = vmatpush.msra.mxu0 0.0
    %161 = vmatpush.msra.mxu0 0.0
    %162 = vmatpush.msra.mxu0 0.0
    %163 = vmatpush.msra.mxu0 0.0
    %164 = vmatpush.msra.mxu0 0.0
    %165 = vmatpush.msra.mxu0 0.0
    %166 = vmatpush.msra.mxu0 0.0
    %167 = vmatpush.msra.mxu0 0.0
    %168 = vmatpush.msra.mxu0 0.0
    %v169 = vand.u32 %v134, 4294901760
    %170 = vmatpush.msra.mxu0 %v169
    %v171 = vand.u32 %v126, 4294901760
    %172 = vmatpush.msra.mxu0 %v171
    %v173 = vand.u32 %v144, 4294901760
    %v174 = vsub.f32 %v144, %v173
    %v175 = vand.u32 %v174, 4294901760
    %v176 = vsub.f32 %v174, %v175
    %v177 = vand.u32 %v176, 4294901760
    %178 = vmatmul.f32.gmra.mxu0 %v177
    %v179 = vpop.f32.mrf.mxu0
    %v180 = vadd.f32 0.0, %v179
    %v181 = vand.u32 %v147, 4294901760
    %v182 = vsub.f32 %v147, %v181
    %v183 = vand.u32 %v182, 4294901760
    %v184 = vsub.f32 %v182, %v183
    %v185 = vand.u32 %v184, 4294901760
    %186 = vmatmul.f32.gmra.mxu0 %v185
    %v187 = vpop.f32.mrf.mxu0
    %v188 = vadd.f32 0.0, %v187
    %v189 = vand.u32 %v150, 4294901760
    %v190 = vsub.f32 %v150, %v189
    %v191 = vand.u32 %v190, 4294901760
    %v192 = vsub.f32 %v190, %v191
    %v193 = vand.u32 %v192, 4294901760
    %194 = vmatmul.f32.gmra.mxu0 %v193
    %v195 = vpop.f32.mrf.mxu0
    %v196 = vadd.f32 0.0, %v195
    %v197 = vand.u32 %v153, 4294901760
    %v198 = vsub.f32 %v153, %v197
    %v199 = vand.u32 %v198, 4294901760
    %v200 = vsub.f32 %v198, %v199
    %v201 = vand.u32 %v200, 4294901760
    %202 = vmatmul.f32.gmra.mxu0 %v201
    %v203 = vpop.f32.mrf.mxu0
    %v204 = vadd.f32 0.0, %v203
    %205 = vdwg.mxu0
    %206 = vmatpush.msra.mxu0 0.0
    %207 = vmatpush.msra.mxu0 0.0
    %208 = vmatpush.msra.mxu0 0.0
    %209 = vmatpush.msra.mxu0 0.0
    %210 = vmatpush.msra.mxu0 0.0
    %211 = vmatpush.msra.mxu0 0.0
    %212 = vmatpush.msra.mxu0 0.0
    %213 = vmatpush.msra.mxu0 0.0
    %214 = vmatpush.msra.mxu0 0.0
    %215 = vmatpush.msra.mxu0 0.0
    %216 = vmatpush.msra.mxu0 0.0
    %217 = vmatpush.msra.mxu0 0.0
    %218 = vmatpush.msra.mxu0 0.0
    %219 = vmatpush.msra.mxu0 0.0
    %v220 = vand.u32 %v134, 4294901760
    %v221 = vsub.f32 %v134, %v220
    %v222 = vand.u32 %v221, 4294901760
    %v223 = vsub.f32 %v221, %v222
    %v224 = vand.u32 %v223, 4294901760
    %225 = vmatpush.msra.mxu0 %v224
    %v226 = vand.u32 %v126, 4294901760
    %v227 = vsub.f32 %v126, %v226
    %v228 = vand.u32 %v227, 4294901760
    %v229 = vsub.f32 %v227, %v228
    %v230 = vand.u32 %v229, 4294901760
    %231 = vmatpush.msra.mxu0 %v230
    %v232 = vand.u32 %v144, 4294901760
    %233 = vmatmul.f32.gmra.mxu0 %v232
    %v234 = vpop.f32.mrf.mxu0
    %v235 = vadd.f32 %v180, %v234
    %v236 = vand.u32 %v147, 4294901760
    %237 = vmatmul.f32.gmra.mxu0 %v236
    %v238 = vpop.f32.mrf.mxu0
    %v239 = vadd.f32 %v188, %v238
    %v240 = vand.u32 %v150, 4294901760
    %241 = vmatmul.f32.gmra.mxu0 %v240
    %v242 = vpop.f32.mrf.mxu0
    %v243 = vadd.f32 %v196, %v242
    %v244 = vand.u32 %v153, 4294901760
    %245 = vmatmul.f32.gmra.mxu0 %v244
    %v246 = vpop.f32.mrf.mxu0
    %v247 = vadd.f32 %v204, %v246
    %248 = vdwg.mxu0
    %249 = vmatpush.msra.mxu0 0.0
    %250 = vmatpush.msra.mxu0 0.0
    %251 = vmatpush.msra.mxu0 0.0
    %252 = vmatpush.msra.mxu0 0.0
    %253 = vmatpush.msra.mxu0 0.0
    %254 = vmatpush.msra.mxu0 0.0
    %255 = vmatpush.msra.mxu0 0.0
    %256 = vmatpush.msra.mxu0 0.0
    %257 = vmatpush.msra.mxu0 0.0
    %258 = vmatpush.msra.mxu0 0.0
    %259 = vmatpush.msra.mxu0 0.0
    %260 = vmatpush.msra.mxu0 0.0
    %261 = vmatpush.msra.mxu0 0.0
    %262 = vmatpush.msra.mxu0 0.0
    %v263 = vand.u32 %v134, 4294901760
    %v264 = vsub.f32 %v134, %v263
    %265 = vmatpush.msra.mxu0 %v264
    %v266 = vand.u32 %v126, 4294901760
    %v267 = vsub.f32 %v126, %v266
    %268 = vmatpush.msra.mxu0 %v267
    %v269 = vand.u32 %v144, 4294901760
    %v270 = vsub.f32 %v144, %v269
    %271 = vmatmul.f32.gmra.mxu0 %v270
    %v272 = vpop.f32.mrf.mxu0
    %v273 = vadd.f32 %v235, %v272
    %v274 = vand.u32 %v147, 4294901760
    %v275 = vsub.f32 %v147, %v274
    %276 = vmatmul.f32.gmra.mxu0 %v275
    %v277 = vpop.f32.mrf.mxu0
    %v278 = vadd.f32 %v239, %v277
    %v279 = vand.u32 %v150, 4294901760
    %v280 = vsub.f32 %v150, %v279
    %281 = vmatmul.f32.gmra.mxu0 %v280
    %v282 = vpop.f32.mrf.mxu0
    %v283 = vadd.f32 %v243, %v282
    %v284 = vand.u32 %v153, 4294901760
    %v285 = vsub.f32 %v153, %v284
    %286 = vmatmul.f32.gmra.mxu0 %v285
    %v287 = vpop.f32.mrf.mxu0
    %v288 = vadd.f32 %v247, %v287
    %289 = vdwg.mxu0
    %290 = vmatpush.msra.mxu0 0.0
    %291 = vmatpush.msra.mxu0 0.0
    %292 = vmatpush.msra.mxu0 0.0
    %293 = vmatpush.msra.mxu0 0.0
    %294 = vmatpush.msra.mxu0 0.0
    %295 = vmatpush.msra.mxu0 0.0
    %296 = vmatpush.msra.mxu0 0.0
    %297 = vmatpush.msra.mxu0 0.0
    %298 = vmatpush.msra.mxu0 0.0
    %299 = vmatpush.msra.mxu0 0.0
    %300 = vmatpush.msra.mxu0 0.0
    %301 = vmatpush.msra.mxu0 0.0
    %302 = vmatpush.msra.mxu0 0.0
    %303 = vmatpush.msra.mxu0 0.0
    %v304 = vand.u32 %v134, 4294901760
    %305 = vmatpush.msra.mxu0 %v304
    %v306 = vand.u32 %v126, 4294901760
    %307 = vmatpush.msra.mxu0 %v306
    %v308 = vand.u32 %v144, 4294901760
    %v309 = vsub.f32 %v144, %v308
    %v310 = vand.u32 %v309, 4294901760
    %311 = vmatmul.f32.gmra.mxu0 %v310
    %v312 = vpop.f32.mrf.mxu0
    %v313 = vadd.f32 %v273, %v312
    %v314 = vand.u32 %v147, 4294901760
    %v315 = vsub.f32 %v147, %v314
    %v316 = vand.u32 %v315, 4294901760
    %317 = vmatmul.f32.gmra.mxu0 %v316
    %v318 = vpop.f32.mrf.mxu0
    %v319 = vadd.f32 %v278, %v318
    %v320 = vand.u32 %v150, 4294901760
    %v321 = vsub.f32 %v150, %v320
    %v322 = vand.u32 %v321, 4294901760
    %323 = vmatmul.f32.gmra.mxu0 %v322
    %v324 = vpop.f32.mrf.mxu0
    %v325 = vadd.f32 %v283, %v324
    %v326 = vand.u32 %v153, 4294901760
    %v327 = vsub.f32 %v153, %v326
    %v328 = vand.u32 %v327, 4294901760
    %329 = vmatmul.f32.gmra.mxu0 %v328
    %v330 = vpop.f32.mrf.mxu0
    %v331 = vadd.f32 %v288, %v330
    %332 = vdwg.mxu0
    %333 = vmatpush.msra.mxu0 0.0
    %334 = vmatpush.msra.mxu0 0.0
    %335 = vmatpush.msra.mxu0 0.0
    %336 = vmatpush.msra.mxu0 0.0
    %337 = vmatpush.msra.mxu0 0.0
    %338 = vmatpush.msra.mxu0 0.0
    %339 = vmatpush.msra.mxu0 0.0
    %340 = vmatpush.msra.mxu0 0.0
    %341 = vmatpush.msra.mxu0 0.0
    %342 = vmatpush.msra.mxu0 0.0
    %343 = vmatpush.msra.mxu0 0.0
    %344 = vmatpush.msra.mxu0 0.0
    %345 = vmatpush.msra.mxu0 0.0
    %346 = vmatpush.msra.mxu0 0.0
    %v347 = vand.u32 %v134, 4294901760
    %v348 = vsub.f32 %v134, %v347
    %v349 = vand.u32 %v348, 4294901760
    %350 = vmatpush.msra.mxu0 %v349
    %v351 = vand.u32 %v126, 4294901760
    %v352 = vsub.f32 %v126, %v351
    %v353 = vand.u32 %v352, 4294901760
    %354 = vmatpush.msra.mxu0 %v353
    %v355 = vand.u32 %v144, 4294901760
    %356 = vmatmul.f32.gmra.mxu0 %v355
    %v357 = vpop.f32.mrf.mxu0
    %v358 = vadd.f32 %v313, %v357
    %v359 = vand.u32 %v147, 4294901760
    %360 = vmatmul.f32.gmra.mxu0 %v359
    %v361 = vpop.f32.mrf.mxu0
    %v362 = vadd.f32 %v319, %v361
    %v363 = vand.u32 %v150, 4294901760
    %364 = vmatmul.f32.gmra.mxu0 %v363
    %v365 = vpop.f32.mrf.mxu0
    %v366 = vadd.f32 %v325, %v365
    %v367 = vand.u32 %v153, 4294901760
    %368 = vmatmul.f32.gmra.mxu0 %v367
    %v369 = vpop.f32.mrf.mxu0
    %v370 = vadd.f32 %v331, %v369
    %371 = vdwg.mxu0
    %372 = vmatpush.msra.mxu0 0.0
    %373 = vmatpush.msra.mxu0 0.0
    %374 = vmatpush.msra.mxu0 0.0
    %375 = vmatpush.msra.mxu0 0.0
    %376 = vmatpush.msra.mxu0 0.0
    %377 = vmatpush.msra.mxu0 0.0
    %378 = vmatpush.msra.mxu0 0.0
    %379 = vmatpush.msra.mxu0 0.0
    %380 = vmatpush.msra.mxu0 0.0
    %381 = vmatpush.msra.mxu0 0.0
    %382 = vmatpush.msra.mxu0 0.0
    %383 = vmatpush.msra.mxu0 0.0
    %384 = vmatpush.msra.mxu0 0.0
    %385 = vmatpush.msra.mxu0 0.0
    %v386 = vand.u32 %v134, 4294901760
    %387 = vmatpush.msra.mxu0 %v386
    %v388 = vand.u32 %v126, 4294901760
    %389 = vmatpush.msra.mxu0 %v388
    %v390 = vand.u32 %v144, 4294901760
    %391 = vmatmul.f32.gmra.mxu0 %v390
    %v392 = vpop.f32.mrf.mxu0
    %v393 = vadd.f32 %v358, %v392
    %v394 = vand.u32 %v147, 4294901760
    %395 = vmatmul.f32.gmra.mxu0 %v394
    %v396 = vpop.f32.mrf.mxu0
    %v397 = vadd.f32 %v362, %v396
    %v398 = vand.u32 %v150, 4294901760
    %399 = vmatmul.f32.gmra.mxu0 %v398
    %v400 = vpop.f32.mrf.mxu0
    %v401 = vadd.f32 %v366, %v400
    %v402 = vand.u32 %v153, 4294901760
    %403 = vmatmul.f32.gmra.mxu0 %v402
    %v404 = vpop.f32.mrf.mxu0
    %v405 = vadd.f32 %v370, %v404
    %406 = vdwg.mxu0
    %407 = vmatpush.msra.mxu0 0.0
    %408 = vmatpush.msra.mxu0 0.0
    %409 = vmatpush.msra.mxu0 0.0
    %410 = vmatpush.msra.mxu0 0.0
    %411 = vmatpush.msra.mxu0 0.0
    %412 = vmatpush.msra.mxu0 0.0
    %413 = vmatpush.msra.mxu0 0.0
    %414 = vmatpush.msra.mxu0 0.0
    %415 = vmatpush.msra.mxu0 0.0
    %416 = vmatpush.msra.mxu0 0.0
    %417 = vmatpush.msra.mxu0 0.0
    %418 = vmatpush.msra.mxu0 0.0
    %419 = vmatpush.msra.mxu0 0.0
    %420 = vmatpush.msra.mxu0 0.0
    %v421 = vand.u32 %v135, 4294901760
    %422 = vmatpush.msra.mxu0 %v421
    %v423 = vand.u32 %v127, 4294901760
    %424 = vmatpush.msra.mxu0 %v423
    %v425 = vand.u32 %v144, 4294901760
    %v426 = vsub.f32 %v144, %v425
    %v427 = vand.u32 %v426, 4294901760
    %v428 = vsub.f32 %v426, %v427
    %v429 = vand.u32 %v428, 4294901760
    %430 = vmatmul.f32.gmra.mxu0 %v429
    %v431 = vpop.f32.mrf.mxu0
    %v432 = vadd.f32 0.0, %v431
    %v433 = vand.u32 %v147, 4294901760
    %v434 = vsub.f32 %v147, %v433
    %v435 = vand.u32 %v434, 4294901760
    %v436 = vsub.f32 %v434, %v435
    %v437 = vand.u32 %v436, 4294901760
    %438 = vmatmul.f32.gmra.mxu0 %v437
    %v439 = vpop.f32.mrf.mxu0
    %v440 = vadd.f32 0.0, %v439
    %v441 = vand.u32 %v150, 4294901760
    %v442 = vsub.f32 %v150, %v441
    %v443 = vand.u32 %v442, 4294901760
    %v444 = vsub.f32 %v442, %v443
    %v445 = vand.u32 %v444, 4294901760
    %446 = vmatmul.f32.gmra.mxu0 %v445
    %v447 = vpop.f32.mrf.mxu0
    %v448 = vadd.f32 0.0, %v447
    %v449 = vand.u32 %v153, 4294901760
    %v450 = vsub.f32 %v153, %v449
    %v451 = vand.u32 %v450, 4294901760
    %v452 = vsub.f32 %v450, %v451
    %v453 = vand.u32 %v452, 4294901760
    %454 = vmatmul.f32.gmra.mxu0 %v453
    %v455 = vpop.f32.mrf.mxu0
    %v456 = vadd.f32 0.0, %v455
    %457 = vdwg.mxu0
    %458 = vmatpush.msra.mxu0 0.0
    %459 = vmatpush.msra.mxu0 0.0
    %460 = vmatpush.msra.mxu0 0.0
    %461 = vmatpush.msra.mxu0 0.0
    %462 = vmatpush.msra.mxu0 0.0
    %463 = vmatpush.msra.mxu0 0.0
    %464 = vmatpush.msra.mxu0 0.0
    %465 = vmatpush.msra.mxu0 0.0
    %466 = vmatpush.msra.mxu0 0.0
    %467 = vmatpush.msra.mxu0 0.0
    %468 = vmatpush.msra.mxu0 0.0
    %469 = vmatpush.msra.mxu0 0.0
    %470 = vmatpush.msra.mxu0 0.0
    %471 = vmatpush.msra.mxu0 0.0
    %v472 = vand.u32 %v135, 4294901760
    %v473 = vsub.f32 %v135, %v472
    %v474 = vand.u32 %v473, 4294901760
    %v475 = vsub.f32 %v473, %v474
    %v476 = vand.u32 %v475, 4294901760
    %477 = vmatpush.msra.mxu0 %v476
    %v478 = vand.u32 %v127, 4294901760
    %v479 = vsub.f32 %v127, %v478
    %v480 = vand.u32 %v479, 4294901760
    %v481 = vsub.f32 %v479, %v480
    %v482 = vand.u32 %v481, 4294901760
    %483 = vmatpush.msra.mxu0 %v482
    %v484 = vand.u32 %v144, 4294901760
    %485 = vmatmul.f32.gmra.mxu0 %v484
    %v486 = vpop.f32.mrf.mxu0
    %v487 = vadd.f32 %v432, %v486
    %v488 = vand.u32 %v147, 4294901760
    %489 = vmatmul.f32.gmra.mxu0 %v488
    %v490 = vpop.f32.mrf.mxu0
    %v491 = vadd.f32 %v440, %v490
    %v492 = vand.u32 %v150, 4294901760
    %493 = vmatmul.f32.gmra.mxu0 %v492
    %v494 = vpop.f32.mrf.mxu0
    %v495 = vadd.f32 %v448, %v494
    %v496 = vand.u32 %v153, 4294901760
    %497 = vmatmul.f32.gmra.mxu0 %v496
    %v498 = vpop.f32.mrf.mxu0
    %v499 = vadd.f32 %v456, %v498
    %500 = vdwg.mxu0
    %501 = vmatpush.msra.mxu0 0.0
    %502 = vmatpush.msra.mxu0 0.0
    %503 = vmatpush.msra.mxu0 0.0
    %504 = vmatpush.msra.mxu0 0.0
    %505 = vmatpush.msra.mxu0 0.0
    %506 = vmatpush.msra.mxu0 0.0
    %507 = vmatpush.msra.mxu0 0.0
    %508 = vmatpush.msra.mxu0 0.0
    %509 = vmatpush.msra.mxu0 0.0
    %510 = vmatpush.msra.mxu0 0.0
    %511 = vmatpush.msra.mxu0 0.0
    %512 = vmatpush.msra.mxu0 0.0
    %513 = vmatpush.msra.mxu0 0.0
    %514 = vmatpush.msra.mxu0 0.0
    %v515 = vand.u32 %v135, 4294901760
    %v516 = vsub.f32 %v135, %v515
    %517 = vmatpush.msra.mxu0 %v516
    %v518 = vand.u32 %v127, 4294901760
    %v519 = vsub.f32 %v127, %v518
    %520 = vmatpush.msra.mxu0 %v519
    %v521 = vand.u32 %v144, 4294901760
    %v522 = vsub.f32 %v144, %v521
    %523 = vmatmul.f32.gmra.mxu0 %v522
    %v524 = vpop.f32.mrf.mxu0
    %v525 = vadd.f32 %v487, %v524
    %v526 = vand.u32 %v147, 4294901760
    %v527 = vsub.f32 %v147, %v526
    %528 = vmatmul.f32.gmra.mxu0 %v527
    %v529 = vpop.f32.mrf.mxu0
    %v530 = vadd.f32 %v491, %v529
    %v531 = vand.u32 %v150, 4294901760
    %v532 = vsub.f32 %v150, %v531
    %533 = vmatmul.f32.gmra.mxu0 %v532
    %v534 = vpop.f32.mrf.mxu0
    %v535 = vadd.f32 %v495, %v534
    %v536 = vand.u32 %v153, 4294901760
    %v537 = vsub.f32 %v153, %v536
    %538 = vmatmul.f32.gmra.mxu0 %v537
    %v539 = vpop.f32.mrf.mxu0
    %v540 = vadd.f32 %v499, %v539
    %541 = vdwg.mxu0
    %542 = vmatpush.msra.mxu0 0.0
    %543 = vmatpush.msra.mxu0 0.0
    %544 = vmatpush.msra.mxu0 0.0
    %545 = vmatpush.msra.mxu0 0.0
    %546 = vmatpush.msra.mxu0 0.0
    %547 = vmatpush.msra.mxu0 0.0
    %548 = vmatpush.msra.mxu0 0.0
    %549 = vmatpush.msra.mxu0 0.0
    %550 = vmatpush.msra.mxu0 0.0
    %551 = vmatpush.msra.mxu0 0.0
    %552 = vmatpush.msra.mxu0 0.0
    %553 = vmatpush.msra.mxu0 0.0
    %554 = vmatpush.msra.mxu0 0.0
    %555 = vmatpush.msra.mxu0 0.0
    %v556 = vand.u32 %v135, 4294901760
    %557 = vmatpush.msra.mxu0 %v556
    %v558 = vand.u32 %v127, 4294901760
    %559 = vmatpush.msra.mxu0 %v558
    %v560 = vand.u32 %v144, 4294901760
    %v561 = vsub.f32 %v144, %v560
    %v562 = vand.u32 %v561, 4294901760
    %563 = vmatmul.f32.gmra.mxu0 %v562
    %v564 = vpop.f32.mrf.mxu0
    %v565 = vadd.f32 %v525, %v564
    %v566 = vand.u32 %v147, 4294901760
    %v567 = vsub.f32 %v147, %v566
    %v568 = vand.u32 %v567, 4294901760
    %569 = vmatmul.f32.gmra.mxu0 %v568
    %v570 = vpop.f32.mrf.mxu0
    %v571 = vadd.f32 %v530, %v570
    %v572 = vand.u32 %v150, 4294901760
    %v573 = vsub.f32 %v150, %v572
    %v574 = vand.u32 %v573, 4294901760
    %575 = vmatmul.f32.gmra.mxu0 %v574
    %v576 = vpop.f32.mrf.mxu0
    %v577 = vadd.f32 %v535, %v576
    %v578 = vand.u32 %v153, 4294901760
    %v579 = vsub.f32 %v153, %v578
    %v580 = vand.u32 %v579, 4294901760
    %581 = vmatmul.f32.gmra.mxu0 %v580
    %v582 = vpop.f32.mrf.mxu0
    %v583 = vadd.f32 %v540, %v582
    %584 = vdwg.mxu0
    %585 = vmatpush.msra.mxu0 0.0
    %586 = vmatpush.msra.mxu0 0.0
    %587 = vmatpush.msra.mxu0 0.0
    %588 = vmatpush.msra.mxu0 0.0
    %589 = vmatpush.msra.mxu0 0.0
    %590 = vmatpush.msra.mxu0 0.0
    %591 = vmatpush.msra.mxu0 0.0
    %592 = vmatpush.msra.mxu0 0.0
    %593 = vmatpush.msra.mxu0 0.0
    %594 = vmatpush.msra.mxu0 0.0
    %595 = vmatpush.msra.mxu0 0.0
    %596 = vmatpush.msra.mxu0 0.0
    %597 = vmatpush.msra.mxu0 0.0
    %598 = vmatpush.msra.mxu0 0.0
    %v599 = vand.u32 %v135, 4294901760
    %v600 = vsub.f32 %v135, %v599
    %v601 = vand.u32 %v600, 4294901760
    %602 = vmatpush.msra.mxu0 %v601
    %v603 = vand.u32 %v127, 4294901760
    %v604 = vsub.f32 %v127, %v603
    %v605 = vand.u32 %v604, 4294901760
    %606 = vmatpush.msra.mxu0 %v605
    %v607 = vand.u32 %v144, 4294901760
    %608 = vmatmul.f32.gmra.mxu0 %v607
    %v609 = vpop.f32.mrf.mxu0
    %v610 = vadd.f32 %v565, %v609
    %v611 = vand.u32 %v147, 4294901760
    %612 = vmatmul.f32.gmra.mxu0 %v611
    %v613 = vpop.f32.mrf.mxu0
    %v614 = vadd.f32 %v571, %v613
    %v615 = vand.u32 %v150, 4294901760
    %616 = vmatmul.f32.gmra.mxu0 %v615
    %v617 = vpop.f32.mrf.mxu0
    %v618 = vadd.f32 %v577, %v617
    %v619 = vand.u32 %v153, 4294901760
    %620 = vmatmul.f32.gmra.mxu0 %v619
    %v621 = vpop.f32.mrf.mxu0
    %v622 = vadd.f32 %v583, %v621
    %623 = vdwg.mxu0
    %624 = vmatpush.msra.mxu0 0.0
    %625 = vmatpush.msra.mxu0 0.0
    %626 = vmatpush.msra.mxu0 0.0
    %627 = vmatpush.msra.mxu0 0.0
    %628 = vmatpush.msra.mxu0 0.0
    %629 = vmatpush.msra.mxu0 0.0
    %630 = vmatpush.msra.mxu0 0.0
    %631 = vmatpush.msra.mxu0 0.0
    %632 = vmatpush.msra.mxu0 0.0
    %633 = vmatpush.msra.mxu0 0.0
    %634 = vmatpush.msra.mxu0 0.0
    %635 = vmatpush.msra.mxu0 0.0
    %636 = vmatpush.msra.mxu0 0.0
    %637 = vmatpush.msra.mxu0 0.0
    %v638 = vand.u32 %v135, 4294901760
    %639 = vmatpush.msra.mxu0 %v638
    %v640 = vand.u32 %v127, 4294901760
    %641 = vmatpush.msra.mxu0 %v640
    %v642 = vand.u32 %v144, 4294901760
    %643 = vmatmul.f32.gmra.mxu0 %v642
    %v644 = vpop.f32.mrf.mxu0
    %v645 = vadd.f32 %v610, %v644
    %v646 = vand.u32 %v147, 4294901760
    %647 = vmatmul.f32.gmra.mxu0 %v646
    %v648 = vpop.f32.mrf.mxu0
    %v649 = vadd.f32 %v614, %v648
    %v650 = vand.u32 %v150, 4294901760
    %651 = vmatmul.f32.gmra.mxu0 %v650
    %v652 = vpop.f32.mrf.mxu0
    %v653 = vadd.f32 %v618, %v652
    %v654 = vand.u32 %v153, 4294901760
    %655 = vmatmul.f32.gmra.mxu0 %v654
    %v656 = vpop.f32.mrf.mxu0
    %v657 = vadd.f32 %v622, %v656
    %658 = vdwg.mxu0
    %659 = vmatpush.msra.mxu0 0.0
    %660 = vmatpush.msra.mxu0 0.0
    %661 = vmatpush.msra.mxu0 0.0
    %662 = vmatpush.msra.mxu0 0.0
    %663 = vmatpush.msra.mxu0 0.0
    %664 = vmatpush.msra.mxu0 0.0
    %665 = vmatpush.msra.mxu0 0.0
    %666 = vmatpush.msra.mxu0 0.0
    %667 = vmatpush.msra.mxu0 0.0
    %668 = vmatpush.msra.mxu0 0.0
    %669 = vmatpush.msra.mxu0 0.0
    %670 = vmatpush.msra.mxu0 0.0
    %671 = vmatpush.msra.mxu0 0.0
    %672 = vmatpush.msra.mxu0 0.0
    %v673 = vand.u32 %v136, 4294901760
    %674 = vmatpush.msra.mxu0 %v673
    %v675 = vand.u32 %v128, 4294901760
    %676 = vmatpush.msra.mxu0 %v675
    %v677 = vand.u32 %v144, 4294901760
    %v678 = vsub.f32 %v144, %v677
    %v679 = vand.u32 %v678, 4294901760
    %v680 = vsub.f32 %v678, %v679
    %v681 = vand.u32 %v680, 4294901760
    %682 = vmatmul.f32.gmra.mxu0 %v681
    %v683 = vpop.f32.mrf.mxu0
    %v684 = vand.u32 %v147, 4294901760
    %v685 = vsub.f32 %v147, %v684
    %v686 = vand.u32 %v685, 4294901760
    %v687 = vsub.f32 %v685, %v686
    %v688 = vand.u32 %v687, 4294901760
    %689 = vmatmul.f32.gmra.mxu0 %v688
    %v690 = vpop.f32.mrf.mxu0
    %v691 = vand.u32 %v150, 4294901760
    %v692 = vsub.f32 %v150, %v691
    %v693 = vand.u32 %v692, 4294901760
    %v694 = vsub.f32 %v692, %v693
    %v695 = vand.u32 %v694, 4294901760
    %696 = vmatmul.f32.gmra.mxu0 %v695
    %v697 = vpop.f32.mrf.mxu0
    %v698 = vadd.f32 0.0, %v697
    %v699 = vand.u32 %v153, 4294901760
    %v700 = vsub.f32 %v153, %v699
    %v701 = vand.u32 %v700, 4294901760
    %v702 = vsub.f32 %v700, %v701
    %v703 = vand.u32 %v702, 4294901760
    %704 = vmatmul.f32.gmra.mxu0 %v703
    %v705 = vpop.f32.mrf.mxu0
    %v706 = vadd.f32 0.0, %v705
    %707 = vdwg.mxu0
    %708 = vmatpush.msra.mxu0 0.0
    %709 = vmatpush.msra.mxu0 0.0
    %710 = vmatpush.msra.mxu0 0.0
    %711 = vmatpush.msra.mxu0 0.0
    %712 = vmatpush.msra.mxu0 0.0
    %713 = vmatpush.msra.mxu0 0.0
    %714 = vmatpush.msra.mxu0 0.0
    %715 = vmatpush.msra.mxu0 0.0
    %716 = vmatpush.msra.mxu0 0.0
    %717 = vmatpush.msra.mxu0 0.0
    %718 = vmatpush.msra.mxu0 0.0
    %719 = vmatpush.msra.mxu0 0.0
    %720 = vmatpush.msra.mxu0 0.0
    %721 = vmatpush.msra.mxu0 0.0
    %v722 = vand.u32 %v136, 4294901760
    %v723 = vsub.f32 %v136, %v722
    %v724 = vand.u32 %v723, 4294901760
    %v725 = vsub.f32 %v723, %v724
    %v726 = vand.u32 %v725, 4294901760
    %727 = vmatpush.msra.mxu0 %v726
    %v728 = vand.u32 %v128, 4294901760
    %v729 = vsub.f32 %v128, %v728
    %v730 = vand.u32 %v729, 4294901760
    %v731 = vsub.f32 %v729, %v730
    %v732 = vand.u32 %v731, 4294901760
    %733 = vmatpush.msra.mxu0 %v732
    %v734 = vand.u32 %v144, 4294901760
    %735 = vmatmul.f32.gmra.mxu0 %v734
    %v736 = vpop.f32.mrf.mxu0
    %v737 = vand.u32 %v147, 4294901760
    %738 = vmatmul.f32.gmra.mxu0 %v737
    %v739 = vpop.f32.mrf.mxu0
    %v740 = vand.u32 %v150, 4294901760
    %741 = vmatmul.f32.gmra.mxu0 %v740
    %v742 = vpop.f32.mrf.mxu0
    %v743 = vadd.f32 %v698, %v742
    %v744 = vand.u32 %v153, 4294901760
    %745 = vmatmul.f32.gmra.mxu0 %v744
    %v746 = vpop.f32.mrf.mxu0
    %v747 = vadd.f32 %v706, %v746
    %748 = vdwg.mxu0
    %749 = vmatpush.msra.mxu0 0.0
    %750 = vmatpush.msra.mxu0 0.0
    %751 = vmatpush.msra.mxu0 0.0
    %752 = vmatpush.msra.mxu0 0.0
    %753 = vmatpush.msra.mxu0 0.0
    %754 = vmatpush.msra.mxu0 0.0
    %755 = vmatpush.msra.mxu0 0.0
    %756 = vmatpush.msra.mxu0 0.0
    %757 = vmatpush.msra.mxu0 0.0
    %758 = vmatpush.msra.mxu0 0.0
    %759 = vmatpush.msra.mxu0 0.0
    %760 = vmatpush.msra.mxu0 0.0
    %761 = vmatpush.msra.mxu0 0.0
    %762 = vmatpush.msra.mxu0 0.0
    %v763 = vand.u32 %v136, 4294901760
    %v764 = vsub.f32 %v136, %v763
    %765 = vmatpush.msra.mxu0 %v764
    %v766 = vand.u32 %v128, 4294901760
    %v767 = vsub.f32 %v128, %v766
    %768 = vmatpush.msra.mxu0 %v767
    %v769 = vand.u32 %v144, 4294901760
    %v770 = vsub.f32 %v144, %v769
    %771 = vmatmul.f32.gmra.mxu0 %v770
    %v772 = vpop.f32.mrf.mxu0
    %v773 = vand.u32 %v147, 4294901760
    %v774 = vsub.f32 %v147, %v773
    %775 = vmatmul.f32.gmra.mxu0 %v774
    %v776 = vpop.f32.mrf.mxu0
    %v777 = vand.u32 %v150, 4294901760
    %v778 = vsub.f32 %v150, %v777
    %779 = vmatmul.f32.gmra.mxu0 %v778
    %v780 = vpop.f32.mrf.mxu0
    %v781 = vadd.f32 %v743, %v780
    %v782 = vand.u32 %v153, 4294901760
    %v783 = vsub.f32 %v153, %v782
    %784 = vmatmul.f32.gmra.mxu0 %v783
    %v785 = vpop.f32.mrf.mxu0
    %v786 = vadd.f32 %v747, %v785
    %787 = vdwg.mxu0
    %788 = vmatpush.msra.mxu0 0.0
    %789 = vmatpush.msra.mxu0 0.0
    %790 = vmatpush.msra.mxu0 0.0
    %791 = vmatpush.msra.mxu0 0.0
    %792 = vmatpush.msra.mxu0 0.0
    %793 = vmatpush.msra.mxu0 0.0
    %794 = vmatpush.msra.mxu0 0.0
    %795 = vmatpush.msra.mxu0 0.0
    %796 = vmatpush.msra.mxu0 0.0
    %797 = vmatpush.msra.mxu0 0.0
    %798 = vmatpush.msra.mxu0 0.0
    %799 = vmatpush.msra.mxu0 0.0
    %800 = vmatpush.msra.mxu0 0.0
    %801 = vmatpush.msra.mxu0 0.0
    %v802 = vand.u32 %v136, 4294901760
    %803 = vmatpush.msra.mxu0 %v802
    %v804 = vand.u32 %v128, 4294901760
    %805 = vmatpush.msra.mxu0 %v804
    %v806 = vand.u32 %v144, 4294901760
    %v807 = vsub.f32 %v144, %v806
    %v808 = vand.u32 %v807, 4294901760
    %809 = vmatmul.f32.gmra.mxu0 %v808
    %v810 = vpop.f32.mrf.mxu0
    %v811 = vand.u32 %v147, 4294901760
    %v812 = vsub.f32 %v147, %v811
    %v813 = vand.u32 %v812, 4294901760
    %814 = vmatmul.f32.gmra.mxu0 %v813
    %v815 = vpop.f32.mrf.mxu0
    %v816 = vand.u32 %v150, 4294901760
    %v817 = vsub.f32 %v150, %v816
    %v818 = vand.u32 %v817, 4294901760
    %819 = vmatmul.f32.gmra.mxu0 %v818
    %v820 = vpop.f32.mrf.mxu0
    %v821 = vadd.f32 %v781, %v820
    %v822 = vand.u32 %v153, 4294901760
    %v823 = vsub.f32 %v153, %v822
    %v824 = vand.u32 %v823, 4294901760
    %825 = vmatmul.f32.gmra.mxu0 %v824
    %v826 = vpop.f32.mrf.mxu0
    %v827 = vadd.f32 %v786, %v826
    %828 = vdwg.mxu0
    %829 = vmatpush.msra.mxu0 0.0
    %830 = vmatpush.msra.mxu0 0.0
    %831 = vmatpush.msra.mxu0 0.0
    %832 = vmatpush.msra.mxu0 0.0
    %833 = vmatpush.msra.mxu0 0.0
    %834 = vmatpush.msra.mxu0 0.0
    %835 = vmatpush.msra.mxu0 0.0
    %836 = vmatpush.msra.mxu0 0.0
    %837 = vmatpush.msra.mxu0 0.0
    %838 = vmatpush.msra.mxu0 0.0
    %839 = vmatpush.msra.mxu0 0.0
    %840 = vmatpush.msra.mxu0 0.0
    %841 = vmatpush.msra.mxu0 0.0
    %842 = vmatpush.msra.mxu0 0.0
    %v843 = vand.u32 %v136, 4294901760
    %v844 = vsub.f32 %v136, %v843
    %v845 = vand.u32 %v844, 4294901760
    %846 = vmatpush.msra.mxu0 %v845
    %v847 = vand.u32 %v128, 4294901760
    %v848 = vsub.f32 %v128, %v847
    %v849 = vand.u32 %v848, 4294901760
    %850 = vmatpush.msra.mxu0 %v849
    %v851 = vand.u32 %v144, 4294901760
    %852 = vmatmul.f32.gmra.mxu0 %v851
    %v853 = vpop.f32.mrf.mxu0
    %v854 = vand.u32 %v147, 4294901760
    %855 = vmatmul.f32.gmra.mxu0 %v854
    %v856 = vpop.f32.mrf.mxu0
    %v857 = vand.u32 %v150, 4294901760
    %858 = vmatmul.f32.gmra.mxu0 %v857
    %v859 = vpop.f32.mrf.mxu0
    %v860 = vadd.f32 %v821, %v859
    %v861 = vand.u32 %v153, 4294901760
    %862 = vmatmul.f32.gmra.mxu0 %v861
    %v863 = vpop.f32.mrf.mxu0
    %v864 = vadd.f32 %v827, %v863
    %865 = vdwg.mxu0
    %866 = vmatpush.msra.mxu0 0.0
    %867 = vmatpush.msra.mxu0 0.0
    %868 = vmatpush.msra.mxu0 0.0
    %869 = vmatpush.msra.mxu0 0.0
    %870 = vmatpush.msra.mxu0 0.0
    %871 = vmatpush.msra.mxu0 0.0
    %872 = vmatpush.msra.mxu0 0.0
    %873 = vmatpush.msra.mxu0 0.0
    %874 = vmatpush.msra.mxu0 0.0
    %875 = vmatpush.msra.mxu0 0.0
    %876 = vmatpush.msra.mxu0 0.0
    %877 = vmatpush.msra.mxu0 0.0
    %878 = vmatpush.msra.mxu0 0.0
    %879 = vmatpush.msra.mxu0 0.0
    %v880 = vand.u32 %v136, 4294901760
    %881 = vmatpush.msra.mxu0 %v880
    %v882 = vand.u32 %v128, 4294901760
    %883 = vmatpush.msra.mxu0 %v882
    %v884 = vand.u32 %v144, 4294901760
    %885 = vmatmul.f32.gmra.mxu0 %v884
    %v886 = vpop.f32.mrf.mxu0
    %v887 = vand.u32 %v147, 4294901760
    %888 = vmatmul.f32.gmra.mxu0 %v887
    %v889 = vpop.f32.mrf.mxu0
    %v890 = vand.u32 %v150, 4294901760
    %891 = vmatmul.f32.gmra.mxu0 %v890
    %v892 = vpop.f32.mrf.mxu0
    %v893 = vadd.f32 %v860, %v892
    %v894 = vand.u32 %v153, 4294901760
    %895 = vmatmul.f32.gmra.mxu0 %v894
    %v896 = vpop.f32.mrf.mxu0
    %v897 = vadd.f32 %v864, %v896
    %898 = vdwg.mxu0
    %899 = vmatpush.msra.mxu0 0.0
    %900 = vmatpush.msra.mxu0 0.0
    %901 = vmatpush.msra.mxu0 0.0
    %902 = vmatpush.msra.mxu0 0.0
    %903 = vmatpush.msra.mxu0 0.0
    %904 = vmatpush.msra.mxu0 0.0
    %905 = vmatpush.msra.mxu0 0.0
    %906 = vmatpush.msra.mxu0 0.0
    %907 = vmatpush.msra.mxu0 0.0
    %908 = vmatpush.msra.mxu0 0.0
    %909 = vmatpush.msra.mxu0 0.0
    %910 = vmatpush.msra.mxu0 0.0
    %911 = vmatpush.msra.mxu0 0.0
    %912 = vmatpush.msra.mxu0 0.0
    %v913 = vand.u32 %v137, 4294901760
    %914 = vmatpush.msra.mxu0 %v913
    %v915 = vand.u32 %v129, 4294901760
    %916 = vmatpush.msra.mxu0 %v915
    %v917 = vand.u32 %v144, 4294901760
    %v918 = vsub.f32 %v144, %v917
    %v919 = vand.u32 %v918, 4294901760
    %v920 = vsub.f32 %v918, %v919
    %v921 = vand.u32 %v920, 4294901760
    %922 = vmatmul.f32.gmra.mxu0 %v921
    %v923 = vpop.f32.mrf.mxu0
    %v924 = vadd.f32 0.0, %v923
    %v925 = vand.u32 %v147, 4294901760
    %v926 = vsub.f32 %v147, %v925
    %v927 = vand.u32 %v926, 4294901760
    %v928 = vsub.f32 %v926, %v927
    %v929 = vand.u32 %v928, 4294901760
    %930 = vmatmul.f32.gmra.mxu0 %v929
    %v931 = vpop.f32.mrf.mxu0
    %v932 = vadd.f32 0.0, %v931
    %v933 = vand.u32 %v150, 4294901760
    %v934 = vsub.f32 %v150, %v933
    %v935 = vand.u32 %v934, 4294901760
    %v936 = vsub.f32 %v934, %v935
    %v937 = vand.u32 %v936, 4294901760
    %938 = vmatmul.f32.gmra.mxu0 %v937
    %v939 = vpop.f32.mrf.mxu0
    %v940 = vadd.f32 0.0, %v939
    %v941 = vand.u32 %v153, 4294901760
    %v942 = vsub.f32 %v153, %v941
    %v943 = vand.u32 %v942, 4294901760
    %v944 = vsub.f32 %v942, %v943
    %v945 = vand.u32 %v944, 4294901760
    %946 = vmatmul.f32.gmra.mxu0 %v945
    %v947 = vpop.f32.mrf.mxu0
    %v948 = vadd.f32 0.0, %v947
    %949 = vdwg.mxu0
    %950 = vmatpush.msra.mxu0 0.0
    %951 = vmatpush.msra.mxu0 0.0
    %952 = vmatpush.msra.mxu0 0.0
    %953 = vmatpush.msra.mxu0 0.0
    %954 = vmatpush.msra.mxu0 0.0
    %955 = vmatpush.msra.mxu0 0.0
    %956 = vmatpush.msra.mxu0 0.0
    %957 = vmatpush.msra.mxu0 0.0
    %958 = vmatpush.msra.mxu0 0.0
    %959 = vmatpush.msra.mxu0 0.0
    %960 = vmatpush.msra.mxu0 0.0
    %961 = vmatpush.msra.mxu0 0.0
    %962 = vmatpush.msra.mxu0 0.0
    %963 = vmatpush.msra.mxu0 0.0
    %v964 = vand.u32 %v137, 4294901760
    %v965 = vsub.f32 %v137, %v964
    %v966 = vand.u32 %v965, 4294901760
    %v967 = vsub.f32 %v965, %v966
    %v968 = vand.u32 %v967, 4294901760
    %969 = vmatpush.msra.mxu0 %v968
    %v970 = vand.u32 %v129, 4294901760
    %v971 = vsub.f32 %v129, %v970
    %v972 = vand.u32 %v971, 4294901760
    %v973 = vsub.f32 %v971, %v972
    %v974 = vand.u32 %v973, 4294901760
    %975 = vmatpush.msra.mxu0 %v974
    %v976 = vand.u32 %v144, 4294901760
    %977 = vmatmul.f32.gmra.mxu0 %v976
    %v978 = vpop.f32.mrf.mxu0
    %v979 = vadd.f32 %v924, %v978
    %v980 = vand.u32 %v147, 4294901760
    %981 = vmatmul.f32.gmra.mxu0 %v980
    %v982 = vpop.f32.mrf.mxu0
    %v983 = vadd.f32 %v932, %v982
    %v984 = vand.u32 %v150, 4294901760
    %985 = vmatmul.f32.gmra.mxu0 %v984
    %v986 = vpop.f32.mrf.mxu0
    %v987 = vadd.f32 %v940, %v986
    %v988 = vand.u32 %v153, 4294901760
    %989 = vmatmul.f32.gmra.mxu0 %v988
    %v990 = vpop.f32.mrf.mxu0
    %v991 = vadd.f32 %v948, %v990
    %992 = vdwg.mxu0
    %993 = vmatpush.msra.mxu0 0.0
    %994 = vmatpush.msra.mxu0 0.0
    %995 = vmatpush.msra.mxu0 0.0
    %996 = vmatpush.msra.mxu0 0.0
    %997 = vmatpush.msra.mxu0 0.0
    %998 = vmatpush.msra.mxu0 0.0
    %999 = vmatpush.msra.mxu0 0.0
    %1000 = vmatpush.msra.mxu0 0.0
    %1001 = vmatpush.msra.mxu0 0.0
    %1002 = vmatpush.msra.mxu0 0.0
    %1003 = vmatpush.msra.mxu0 0.0
    %1004 = vmatpush.msra.mxu0 0.0
    %1005 = vmatpush.msra.mxu0 0.0
    %1006 = vmatpush.msra.mxu0 0.0
    %v1007 = vand.u32 %v137, 4294901760
    %v1008 = vsub.f32 %v137, %v1007
    %1009 = vmatpush.msra.mxu0 %v1008
    %v1010 = vand.u32 %v129, 4294901760
    %v1011 = vsub.f32 %v129, %v1010
    %1012 = vmatpush.msra.mxu0 %v1011
    %v1013 = vand.u32 %v144, 4294901760
    %v1014 = vsub.f32 %v144, %v1013
    %1015 = vmatmul.f32.gmra.mxu0 %v1014
    %v1016 = vpop.f32.mrf.mxu0
    %v1017 = vadd.f32 %v979, %v1016
    %v1018 = vand.u32 %v147, 4294901760
    %v1019 = vsub.f32 %v147, %v1018
    %1020 = vmatmul.f32.gmra.mxu0 %v1019
    %v1021 = vpop.f32.mrf.mxu0
    %v1022 = vadd.f32 %v983, %v1021
    %v1023 = vand.u32 %v150, 4294901760
    %v1024 = vsub.f32 %v150, %v1023
    %1025 = vmatmul.f32.gmra.mxu0 %v1024
    %v1026 = vpop.f32.mrf.mxu0
    %v1027 = vadd.f32 %v987, %v1026
    %v1028 = vand.u32 %v153, 4294901760
    %v1029 = vsub.f32 %v153, %v1028
    %1030 = vmatmul.f32.gmra.mxu0 %v1029
    %v1031 = vpop.f32.mrf.mxu0
    %v1032 = vadd.f32 %v991, %v1031
    %1033 = vdwg.mxu0
    %1034 = vmatpush.msra.mxu0 0.0
    %1035 = vmatpush.msra.mxu0 0.0
    %1036 = vmatpush.msra.mxu0 0.0
    %1037 = vmatpush.msra.mxu0 0.0
    %1038 = vmatpush.msra.mxu0 0.0
    %1039 = vmatpush.msra.mxu0 0.0
    %1040 = vmatpush.msra.mxu0 0.0
    %1041 = vmatpush.msra.mxu0 0.0
    %1042 = vmatpush.msra.mxu0 0.0
    %1043 = vmatpush.msra.mxu0 0.0
    %1044 = vmatpush.msra.mxu0 0.0
    %1045 = vmatpush.msra.mxu0 0.0
    %1046 = vmatpush.msra.mxu0 0.0
    %1047 = vmatpush.msra.mxu0 0.0
    %v1048 = vand.u32 %v137, 4294901760
    %1049 = vmatpush.msra.mxu0 %v1048
    %v1050 = vand.u32 %v129, 4294901760
    %1051 = vmatpush.msra.mxu0 %v1050
    %v1052 = vand.u32 %v144, 4294901760
    %v1053 = vsub.f32 %v144, %v1052
    %v1054 = vand.u32 %v1053, 4294901760
    %1055 = vmatmul.f32.gmra.mxu0 %v1054
    %v1056 = vpop.f32.mrf.mxu0
    %v1057 = vadd.f32 %v1017, %v1056
    %v1058 = vand.u32 %v147, 4294901760
    %v1059 = vsub.f32 %v147, %v1058
    %v1060 = vand.u32 %v1059, 4294901760
    %1061 = vmatmul.f32.gmra.mxu0 %v1060
    %v1062 = vpop.f32.mrf.mxu0
    %v1063 = vadd.f32 %v1022, %v1062
    %v1064 = vand.u32 %v150, 4294901760
    %v1065 = vsub.f32 %v150, %v1064
    %v1066 = vand.u32 %v1065, 4294901760
    %1067 = vmatmul.f32.gmra.mxu0 %v1066
    %v1068 = vpop.f32.mrf.mxu0
    %v1069 = vadd.f32 %v1027, %v1068
    %v1070 = vand.u32 %v153, 4294901760
    %v1071 = vsub.f32 %v153, %v1070
    %v1072 = vand.u32 %v1071, 4294901760
    %1073 = vmatmul.f32.gmra.mxu0 %v1072
    %v1074 = vpop.f32.mrf.mxu0
    %v1075 = vadd.f32 %v1032, %v1074
    %1076 = vdwg.mxu0
    %1077 = vmatpush.msra.mxu0 0.0
    %1078 = vmatpush.msra.mxu0 0.0
    %1079 = vmatpush.msra.mxu0 0.0
    %1080 = vmatpush.msra.mxu0 0.0
    %1081 = vmatpush.msra.mxu0 0.0
    %1082 = vmatpush.msra.mxu0 0.0
    %1083 = vmatpush.msra.mxu0 0.0
    %1084 = vmatpush.msra.mxu0 0.0
    %1085 = vmatpush.msra.mxu0 0.0
    %1086 = vmatpush.msra.mxu0 0.0
    %1087 = vmatpush.msra.mxu0 0.0
    %1088 = vmatpush.msra.mxu0 0.0
    %1089 = vmatpush.msra.mxu0 0.0
    %1090 = vmatpush.msra.mxu0 0.0
    %v1091 = vand.u32 %v137, 4294901760
    %v1092 = vsub.f32 %v137, %v1091
    %v1093 = vand.u32 %v1092, 4294901760
    %1094 = vmatpush.msra.mxu0 %v1093
    %v1095 = vand.u32 %v129, 4294901760
    %v1096 = vsub.f32 %v129, %v1095
    %v1097 = vand.u32 %v1096, 4294901760
    %1098 = vmatpush.msra.mxu0 %v1097
    %v1099 = vand.u32 %v144, 4294901760
    %1100 = vmatmul.f32.gmra.mxu0 %v1099
    %v1101 = vpop.f32.mrf.mxu0
    %v1102 = vadd.f32 %v1057, %v1101
    %v1103 = vand.u32 %v147, 4294901760
    %1104 = vmatmul.f32.gmra.mxu0 %v1103
    %v1105 = vpop.f32.mrf.mxu0
    %v1106 = vadd.f32 %v1063, %v1105
    %v1107 = vand.u32 %v150, 4294901760
    %1108 = vmatmul.f32.gmra.mxu0 %v1107
    %v1109 = vpop.f32.mrf.mxu0
    %v1110 = vadd.f32 %v1069, %v1109
    %v1111 = vand.u32 %v153, 4294901760
    %1112 = vmatmul.f32.gmra.mxu0 %v1111
    %v1113 = vpop.f32.mrf.mxu0
    %v1114 = vadd.f32 %v1075, %v1113
    %1115 = vdwg.mxu0
    %1116 = vmatpush.msra.mxu0 0.0
    %1117 = vmatpush.msra.mxu0 0.0
    %1118 = vmatpush.msra.mxu0 0.0
    %1119 = vmatpush.msra.mxu0 0.0
    %1120 = vmatpush.msra.mxu0 0.0
    %1121 = vmatpush.msra.mxu0 0.0
    %1122 = vmatpush.msra.mxu0 0.0
    %1123 = vmatpush.msra.mxu0 0.0
    %1124 = vmatpush.msra.mxu0 0.0
    %1125 = vmatpush.msra.mxu0 0.0
    %1126 = vmatpush.msra.mxu0 0.0
    %1127 = vmatpush.msra.mxu0 0.0
    %1128 = vmatpush.msra.mxu0 0.0
    %1129 = vmatpush.msra.mxu0 0.0
    %v1130 = vand.u32 %v137, 4294901760
    %1131 = vmatpush.msra.mxu0 %v1130
    %v1132 = vand.u32 %v129, 4294901760
    %1133 = vmatpush.msra.mxu0 %v1132
    %v1134 = vand.u32 %v144, 4294901760
    %1135 = vmatmul.f32.gmra.mxu0 %v1134
    %v1136 = vpop.f32.mrf.mxu0
    %v1137 = vadd.f32 %v1102, %v1136
    %v1138 = vand.u32 %v147, 4294901760
    %1139 = vmatmul.f32.gmra.mxu0 %v1138
    %v1140 = vpop.f32.mrf.mxu0
    %v1141 = vadd.f32 %v1106, %v1140
    %v1142 = vand.u32 %v150, 4294901760
    %1143 = vmatmul.f32.gmra.mxu0 %v1142
    %v1144 = vpop.f32.mrf.mxu0
    %v1145 = vadd.f32 %v1110, %v1144
    %v1146 = vand.u32 %v153, 4294901760
    %1147 = vmatmul.f32.gmra.mxu0 %v1146
    %v1148 = vpop.f32.mrf.mxu0
    %v1149 = vadd.f32 %v1114, %v1148
    %1150 = vdwg.mxu0
    %1151 = vmatpush.msra.mxu0 0.0
    %1152 = vmatpush.msra.mxu0 0.0
    %1153 = vmatpush.msra.mxu0 0.0
    %1154 = vmatpush.msra.mxu0 0.0
    %1155 = vmatpush.msra.mxu0 0.0
    %1156 = vmatpush.msra.mxu0 0.0
    %1157 = vmatpush.msra.mxu0 0.0
    %1158 = vmatpush.msra.mxu0 0.0
    %1159 = vmatpush.msra.mxu0 0.0
    %1160 = vmatpush.msra.mxu0 0.0
    %1161 = vmatpush.msra.mxu0 0.0
    %1162 = vmatpush.msra.mxu0 0.0
    %1163 = vmatpush.msra.mxu0 0.0
    %1164 = vmatpush.msra.mxu0 0.0
    %v1165 = vand.u32 %v138, 4294901760
    %1166 = vmatpush.msra.mxu0 %v1165
    %v1167 = vand.u32 %v130, 4294901760
    %1168 = vmatpush.msra.mxu0 %v1167
    %v1169 = vand.u32 %v144, 4294901760
    %v1170 = vsub.f32 %v144, %v1169
    %v1171 = vand.u32 %v1170, 4294901760
    %v1172 = vsub.f32 %v1170, %v1171
    %v1173 = vand.u32 %v1172, 4294901760
    %1174 = vmatmul.f32.gmra.mxu0 %v1173
    %v1175 = vpop.f32.mrf.mxu0
    %v1176 = vadd.f32 0.0, %v1175
    %v1177 = vand.u32 %v147, 4294901760
    %v1178 = vsub.f32 %v147, %v1177
    %v1179 = vand.u32 %v1178, 4294901760
    %v1180 = vsub.f32 %v1178, %v1179
    %v1181 = vand.u32 %v1180, 4294901760
    %1182 = vmatmul.f32.gmra.mxu0 %v1181
    %v1183 = vpop.f32.mrf.mxu0
    %v1184 = vadd.f32 0.0, %v1183
    %v1185 = vand.u32 %v150, 4294901760
    %v1186 = vsub.f32 %v150, %v1185
    %v1187 = vand.u32 %v1186, 4294901760
    %v1188 = vsub.f32 %v1186, %v1187
    %v1189 = vand.u32 %v1188, 4294901760
    %1190 = vmatmul.f32.gmra.mxu0 %v1189
    %v1191 = vpop.f32.mrf.mxu0
    %v1192 = vadd.f32 0.0, %v1191
    %v1193 = vand.u32 %v153, 4294901760
    %v1194 = vsub.f32 %v153, %v1193
    %v1195 = vand.u32 %v1194, 4294901760
    %v1196 = vsub.f32 %v1194, %v1195
    %v1197 = vand.u32 %v1196, 4294901760
    %1198 = vmatmul.f32.gmra.mxu0 %v1197
    %v1199 = vpop.f32.mrf.mxu0
    %v1200 = vadd.f32 0.0, %v1199
    %1201 = vdwg.mxu0
    %1202 = vmatpush.msra.mxu0 0.0
    %1203 = vmatpush.msra.mxu0 0.0
    %1204 = vmatpush.msra.mxu0 0.0
    %1205 = vmatpush.msra.mxu0 0.0
    %1206 = vmatpush.msra.mxu0 0.0
    %1207 = vmatpush.msra.mxu0 0.0
    %1208 = vmatpush.msra.mxu0 0.0
    %1209 = vmatpush.msra.mxu0 0.0
    %1210 = vmatpush.msra.mxu0 0.0
    %1211 = vmatpush.msra.mxu0 0.0
    %1212 = vmatpush.msra.mxu0 0.0
    %1213 = vmatpush.msra.mxu0 0.0
    %1214 = vmatpush.msra.mxu0 0.0
    %1215 = vmatpush.msra.mxu0 0.0
    %v1216 = vand.u32 %v138, 4294901760
    %v1217 = vsub.f32 %v138, %v1216
    %v1218 = vand.u32 %v1217, 4294901760
    %v1219 = vsub.f32 %v1217, %v1218
    %v1220 = vand.u32 %v1219, 4294901760
    %1221 = vmatpush.msra.mxu0 %v1220
    %v1222 = vand.u32 %v130, 4294901760
    %v1223 = vsub.f32 %v130, %v1222
    %v1224 = vand.u32 %v1223, 4294901760
    %v1225 = vsub.f32 %v1223, %v1224
    %v1226 = vand.u32 %v1225, 4294901760
    %1227 = vmatpush.msra.mxu0 %v1226
    %v1228 = vand.u32 %v144, 4294901760
    %1229 = vmatmul.f32.gmra.mxu0 %v1228
    %v1230 = vpop.f32.mrf.mxu0
    %v1231 = vadd.f32 %v1176, %v1230
    %v1232 = vand.u32 %v147, 4294901760
    %1233 = vmatmul.f32.gmra.mxu0 %v1232
    %v1234 = vpop.f32.mrf.mxu0
    %v1235 = vadd.f32 %v1184, %v1234
    %v1236 = vand.u32 %v150, 4294901760
    %1237 = vmatmul.f32.gmra.mxu0 %v1236
    %v1238 = vpop.f32.mrf.mxu0
    %v1239 = vadd.f32 %v1192, %v1238
    %v1240 = vand.u32 %v153, 4294901760
    %1241 = vmatmul.f32.gmra.mxu0 %v1240
    %v1242 = vpop.f32.mrf.mxu0
    %v1243 = vadd.f32 %v1200, %v1242
    %1244 = vdwg.mxu0
    %1245 = vmatpush.msra.mxu0 0.0
    %1246 = vmatpush.msra.mxu0 0.0
    %1247 = vmatpush.msra.mxu0 0.0
    %1248 = vmatpush.msra.mxu0 0.0
    %1249 = vmatpush.msra.mxu0 0.0
    %1250 = vmatpush.msra.mxu0 0.0
    %1251 = vmatpush.msra.mxu0 0.0
    %1252 = vmatpush.msra.mxu0 0.0
    %1253 = vmatpush.msra.mxu0 0.0
    %1254 = vmatpush.msra.mxu0 0.0
    %1255 = vmatpush.msra.mxu0 0.0
    %1256 = vmatpush.msra.mxu0 0.0
    %1257 = vmatpush.msra.mxu0 0.0
    %1258 = vmatpush.msra.mxu0 0.0
    %v1259 = vand.u32 %v138, 4294901760
    %v1260 = vsub.f32 %v138, %v1259
    %1261 = vmatpush.msra.mxu0 %v1260
    %v1262 = vand.u32 %v130, 4294901760
    %v1263 = vsub.f32 %v130, %v1262
    %1264 = vmatpush.msra.mxu0 %v1263
    %v1265 = vand.u32 %v144, 4294901760
    %v1266 = vsub.f32 %v144, %v1265
    %1267 = vmatmul.f32.gmra.mxu0 %v1266
    %v1268 = vpop.f32.mrf.mxu0
    %v1269 = vadd.f32 %v1231, %v1268
    %v1270 = vand.u32 %v147, 4294901760
    %v1271 = vsub.f32 %v147, %v1270
    %1272 = vmatmul.f32.gmra.mxu0 %v1271
    %v1273 = vpop.f32.mrf.mxu0
    %v1274 = vadd.f32 %v1235, %v1273
    %v1275 = vand.u32 %v150, 4294901760
    %v1276 = vsub.f32 %v150, %v1275
    %1277 = vmatmul.f32.gmra.mxu0 %v1276
    %v1278 = vpop.f32.mrf.mxu0
    %v1279 = vadd.f32 %v1239, %v1278
    %v1280 = vand.u32 %v153, 4294901760
    %v1281 = vsub.f32 %v153, %v1280
    %1282 = vmatmul.f32.gmra.mxu0 %v1281
    %v1283 = vpop.f32.mrf.mxu0
    %v1284 = vadd.f32 %v1243, %v1283
    %1285 = vdwg.mxu0
    %1286 = vmatpush.msra.mxu0 0.0
    %1287 = vmatpush.msra.mxu0 0.0
    %1288 = vmatpush.msra.mxu0 0.0
    %1289 = vmatpush.msra.mxu0 0.0
    %1290 = vmatpush.msra.mxu0 0.0
    %1291 = vmatpush.msra.mxu0 0.0
    %1292 = vmatpush.msra.mxu0 0.0
    %1293 = vmatpush.msra.mxu0 0.0
    %1294 = vmatpush.msra.mxu0 0.0
    %1295 = vmatpush.msra.mxu0 0.0
    %1296 = vmatpush.msra.mxu0 0.0
    %1297 = vmatpush.msra.mxu0 0.0
    %1298 = vmatpush.msra.mxu0 0.0
    %1299 = vmatpush.msra.mxu0 0.0
    %v1300 = vand.u32 %v138, 4294901760
    %1301 = vmatpush.msra.mxu0 %v1300
    %v1302 = vand.u32 %v130, 4294901760
    %1303 = vmatpush.msra.mxu0 %v1302
    %v1304 = vand.u32 %v144, 4294901760
    %v1305 = vsub.f32 %v144, %v1304
    %v1306 = vand.u32 %v1305, 4294901760
    %1307 = vmatmul.f32.gmra.mxu0 %v1306
    %v1308 = vpop.f32.mrf.mxu0
    %v1309 = vadd.f32 %v1269, %v1308
    %v1310 = vand.u32 %v147, 4294901760
    %v1311 = vsub.f32 %v147, %v1310
    %v1312 = vand.u32 %v1311, 4294901760
    %1313 = vmatmul.f32.gmra.mxu0 %v1312
    %v1314 = vpop.f32.mrf.mxu0
    %v1315 = vadd.f32 %v1274, %v1314
    %v1316 = vand.u32 %v150, 4294901760
    %v1317 = vsub.f32 %v150, %v1316
    %v1318 = vand.u32 %v1317, 4294901760
    %1319 = vmatmul.f32.gmra.mxu0 %v1318
    %v1320 = vpop.f32.mrf.mxu0
    %v1321 = vadd.f32 %v1279, %v1320
    %v1322 = vand.u32 %v153, 4294901760
    %v1323 = vsub.f32 %v153, %v1322
    %v1324 = vand.u32 %v1323, 4294901760
    %1325 = vmatmul.f32.gmra.mxu0 %v1324
    %v1326 = vpop.f32.mrf.mxu0
    %v1327 = vadd.f32 %v1284, %v1326
    %1328 = vdwg.mxu0
    %1329 = vmatpush.msra.mxu0 0.0
    %1330 = vmatpush.msra.mxu0 0.0
    %1331 = vmatpush.msra.mxu0 0.0
    %1332 = vmatpush.msra.mxu0 0.0
    %1333 = vmatpush.msra.mxu0 0.0
    %1334 = vmatpush.msra.mxu0 0.0
    %1335 = vmatpush.msra.mxu0 0.0
    %1336 = vmatpush.msra.mxu0 0.0
    %1337 = vmatpush.msra.mxu0 0.0
    %1338 = vmatpush.msra.mxu0 0.0
    %1339 = vmatpush.msra.mxu0 0.0
    %1340 = vmatpush.msra.mxu0 0.0
    %1341 = vmatpush.msra.mxu0 0.0
    %1342 = vmatpush.msra.mxu0 0.0
    %v1343 = vand.u32 %v138, 4294901760
    %v1344 = vsub.f32 %v138, %v1343
    %v1345 = vand.u32 %v1344, 4294901760
    %1346 = vmatpush.msra.mxu0 %v1345
    %v1347 = vand.u32 %v130, 4294901760
    %v1348 = vsub.f32 %v130, %v1347
    %v1349 = vand.u32 %v1348, 4294901760
    %1350 = vmatpush.msra.mxu0 %v1349
    %v1351 = vand.u32 %v144, 4294901760
    %1352 = vmatmul.f32.gmra.mxu0 %v1351
    %v1353 = vpop.f32.mrf.mxu0
    %v1354 = vadd.f32 %v1309, %v1353
    %v1355 = vand.u32 %v147, 4294901760
    %1356 = vmatmul.f32.gmra.mxu0 %v1355
    %v1357 = vpop.f32.mrf.mxu0
    %v1358 = vadd.f32 %v1315, %v1357
    %v1359 = vand.u32 %v150, 4294901760
    %1360 = vmatmul.f32.gmra.mxu0 %v1359
    %v1361 = vpop.f32.mrf.mxu0
    %v1362 = vadd.f32 %v1321, %v1361
    %v1363 = vand.u32 %v153, 4294901760
    %1364 = vmatmul.f32.gmra.mxu0 %v1363
    %v1365 = vpop.f32.mrf.mxu0
    %v1366 = vadd.f32 %v1327, %v1365
    %1367 = vdwg.mxu0
    %1368 = vmatpush.msra.mxu0 0.0
    %1369 = vmatpush.msra.mxu0 0.0
    %1370 = vmatpush.msra.mxu0 0.0
    %1371 = vmatpush.msra.mxu0 0.0
    %1372 = vmatpush.msra.mxu0 0.0
    %1373 = vmatpush.msra.mxu0 0.0
    %1374 = vmatpush.msra.mxu0 0.0
    %1375 = vmatpush.msra.mxu0 0.0
    %1376 = vmatpush.msra.mxu0 0.0
    %1377 = vmatpush.msra.mxu0 0.0
    %1378 = vmatpush.msra.mxu0 0.0
    %1379 = vmatpush.msra.mxu0 0.0
    %1380 = vmatpush.msra.mxu0 0.0
    %1381 = vmatpush.msra.mxu0 0.0
    %v1382 = vand.u32 %v138, 4294901760
    %1383 = vmatpush.msra.mxu0 %v1382
    %v1384 = vand.u32 %v130, 4294901760
    %1385 = vmatpush.msra.mxu0 %v1384
    %v1386 = vand.u32 %v144, 4294901760
    %1387 = vmatmul.f32.gmra.mxu0 %v1386
    %v1388 = vpop.f32.mrf.mxu0
    %v1389 = vadd.f32 %v1354, %v1388
    %v1390 = vand.u32 %v147, 4294901760
    %1391 = vmatmul.f32.gmra.mxu0 %v1390
    %v1392 = vpop.f32.mrf.mxu0
    %v1393 = vadd.f32 %v1358, %v1392
    %v1394 = vand.u32 %v150, 4294901760
    %1395 = vmatmul.f32.gmra.mxu0 %v1394
    %v1396 = vpop.f32.mrf.mxu0
    %v1397 = vadd.f32 %v1362, %v1396
    %v1398 = vand.u32 %v153, 4294901760
    %1399 = vmatmul.f32.gmra.mxu0 %v1398
    %v1400 = vpop.f32.mrf.mxu0
    %v1401 = vadd.f32 %v1366, %v1400
    %1402 = vdwg.mxu0
    %1403 = vmatpush.msra.mxu0 0.0
    %1404 = vmatpush.msra.mxu0 0.0
    %1405 = vmatpush.msra.mxu0 0.0
    %1406 = vmatpush.msra.mxu0 0.0
    %1407 = vmatpush.msra.mxu0 0.0
    %1408 = vmatpush.msra.mxu0 0.0
    %1409 = vmatpush.msra.mxu0 0.0
    %1410 = vmatpush.msra.mxu0 0.0
    %1411 = vmatpush.msra.mxu0 0.0
    %1412 = vmatpush.msra.mxu0 0.0
    %1413 = vmatpush.msra.mxu0 0.0
    %1414 = vmatpush.msra.mxu0 0.0
    %1415 = vmatpush.msra.mxu0 0.0
    %1416 = vmatpush.msra.mxu0 0.0
    %v1417 = vand.u32 %v139, 4294901760
    %1418 = vmatpush.msra.mxu0 %v1417
    %v1419 = vand.u32 %v131, 4294901760
    %1420 = vmatpush.msra.mxu0 %v1419
    %v1421 = vand.u32 %v144, 4294901760
    %v1422 = vsub.f32 %v144, %v1421
    %v1423 = vand.u32 %v1422, 4294901760
    %v1424 = vsub.f32 %v1422, %v1423
    %v1425 = vand.u32 %v1424, 4294901760
    %1426 = vmatmul.f32.gmra.mxu0 %v1425
    %v1427 = vpop.f32.mrf.mxu0
    %v1428 = vand.u32 %v147, 4294901760
    %v1429 = vsub.f32 %v147, %v1428
    %v1430 = vand.u32 %v1429, 4294901760
    %v1431 = vsub.f32 %v1429, %v1430
    %v1432 = vand.u32 %v1431, 4294901760
    %1433 = vmatmul.f32.gmra.mxu0 %v1432
    %v1434 = vpop.f32.mrf.mxu0
    %v1435 = vand.u32 %v150, 4294901760
    %v1436 = vsub.f32 %v150, %v1435
    %v1437 = vand.u32 %v1436, 4294901760
    %v1438 = vsub.f32 %v1436, %v1437
    %v1439 = vand.u32 %v1438, 4294901760
    %1440 = vmatmul.f32.gmra.mxu0 %v1439
    %v1441 = vpop.f32.mrf.mxu0
    %v1442 = vadd.f32 0.0, %v1441
    %v1443 = vand.u32 %v153, 4294901760
    %v1444 = vsub.f32 %v153, %v1443
    %v1445 = vand.u32 %v1444, 4294901760
    %v1446 = vsub.f32 %v1444, %v1445
    %v1447 = vand.u32 %v1446, 4294901760
    %1448 = vmatmul.f32.gmra.mxu0 %v1447
    %v1449 = vpop.f32.mrf.mxu0
    %v1450 = vadd.f32 0.0, %v1449
    %1451 = vdwg.mxu0
    %1452 = vmatpush.msra.mxu0 0.0
    %1453 = vmatpush.msra.mxu0 0.0
    %1454 = vmatpush.msra.mxu0 0.0
    %1455 = vmatpush.msra.mxu0 0.0
    %1456 = vmatpush.msra.mxu0 0.0
    %1457 = vmatpush.msra.mxu0 0.0
    %1458 = vmatpush.msra.mxu0 0.0
    %1459 = vmatpush.msra.mxu0 0.0
    %1460 = vmatpush.msra.mxu0 0.0
    %1461 = vmatpush.msra.mxu0 0.0
    %1462 = vmatpush.msra.mxu0 0.0
    %1463 = vmatpush.msra.mxu0 0.0
    %1464 = vmatpush.msra.mxu0 0.0
    %1465 = vmatpush.msra.mxu0 0.0
    %v1466 = vand.u32 %v139, 4294901760
    %v1467 = vsub.f32 %v139, %v1466
    %v1468 = vand.u32 %v1467, 4294901760
    %v1469 = vsub.f32 %v1467, %v1468
    %v1470 = vand.u32 %v1469, 4294901760
    %1471 = vmatpush.msra.mxu0 %v1470
    %v1472 = vand.u32 %v131, 4294901760
    %v1473 = vsub.f32 %v131, %v1472
    %v1474 = vand.u32 %v1473, 4294901760
    %v1475 = vsub.f32 %v1473, %v1474
    %v1476 = vand.u32 %v1475, 4294901760
    %1477 = vmatpush.msra.mxu0 %v1476
    %v1478 = vand.u32 %v144, 4294901760
    %1479 = vmatmul.f32.gmra.mxu0 %v1478
    %v1480 = vpop.f32.mrf.mxu0
    %v1481 = vand.u32 %v147, 4294901760
    %1482 = vmatmul.f32.gmra.mxu0 %v1481
    %v1483 = vpop.f32.mrf.mxu0
    %v1484 = vand.u32 %v150, 4294901760
    %1485 = vmatmul.f32.gmra.mxu0 %v1484
    %v1486 = vpop.f32.mrf.mxu0
    %v1487 = vadd.f32 %v1442, %v1486
    %v1488 = vand.u32 %v153, 4294901760
    %1489 = vmatmul.f32.gmra.mxu0 %v1488
    %v1490 = vpop.f32.mrf.mxu0
    %v1491 = vadd.f32 %v1450, %v1490
    %1492 = vdwg.mxu0
    %1493 = vmatpush.msra.mxu0 0.0
    %1494 = vmatpush.msra.mxu0 0.0
    %1495 = vmatpush.msra.mxu0 0.0
    %1496 = vmatpush.msra.mxu0 0.0
    %1497 = vmatpush.msra.mxu0 0.0
    %1498 = vmatpush.msra.mxu0 0.0
    %1499 = vmatpush.msra.mxu0 0.0
    %1500 = vmatpush.msra.mxu0 0.0
    %1501 = vmatpush.msra.mxu0 0.0
    %1502 = vmatpush.msra.mxu0 0.0
    %1503 = vmatpush.msra.mxu0 0.0
    %1504 = vmatpush.msra.mxu0 0.0
    %1505 = vmatpush.msra.mxu0 0.0
    %1506 = vmatpush.msra.mxu0 0.0
    %v1507 = vand.u32 %v139, 4294901760
    %v1508 = vsub.f32 %v139, %v1507
    %1509 = vmatpush.msra.mxu0 %v1508
    %v1510 = vand.u32 %v131, 4294901760
    %v1511 = vsub.f32 %v131, %v1510
    %1512 = vmatpush.msra.mxu0 %v1511
    %v1513 = vand.u32 %v144, 4294901760
    %v1514 = vsub.f32 %v144, %v1513
    %1515 = vmatmul.f32.gmra.mxu0 %v1514
    %v1516 = vpop.f32.mrf.mxu0
    %v1517 = vand.u32 %v147, 4294901760
    %v1518 = vsub.f32 %v147, %v1517
    %1519 = vmatmul.f32.gmra.mxu0 %v1518
    %v1520 = vpop.f32.mrf.mxu0
    %v1521 = vand.u32 %v150, 4294901760
    %v1522 = vsub.f32 %v150, %v1521
    %1523 = vmatmul.f32.gmra.mxu0 %v1522
    %v1524 = vpop.f32.mrf.mxu0
    %v1525 = vadd.f32 %v1487, %v1524
    %v1526 = vand.u32 %v153, 4294901760
    %v1527 = vsub.f32 %v153, %v1526
    %1528 = vmatmul.f32.gmra.mxu0 %v1527
    %v1529 = vpop.f32.mrf.mxu0
    %v1530 = vadd.f32 %v1491, %v1529
    %1531 = vdwg.mxu0
    %1532 = vmatpush.msra.mxu0 0.0
    %1533 = vmatpush.msra.mxu0 0.0
    %1534 = vmatpush.msra.mxu0 0.0
    %1535 = vmatpush.msra.mxu0 0.0
    %1536 = vmatpush.msra.mxu0 0.0
    %1537 = vmatpush.msra.mxu0 0.0
    %1538 = vmatpush.msra.mxu0 0.0
    %1539 = vmatpush.msra.mxu0 0.0
    %1540 = vmatpush.msra.mxu0 0.0
    %1541 = vmatpush.msra.mxu0 0.0
    %1542 = vmatpush.msra.mxu0 0.0
    %1543 = vmatpush.msra.mxu0 0.0
    %1544 = vmatpush.msra.mxu0 0.0
    %1545 = vmatpush.msra.mxu0 0.0
    %v1546 = vand.u32 %v139, 4294901760
    %1547 = vmatpush.msra.mxu0 %v1546
    %v1548 = vand.u32 %v131, 4294901760
    %1549 = vmatpush.msra.mxu0 %v1548
    %v1550 = vand.u32 %v144, 4294901760
    %v1551 = vsub.f32 %v144, %v1550
    %v1552 = vand.u32 %v1551, 4294901760
    %1553 = vmatmul.f32.gmra.mxu0 %v1552
    %v1554 = vpop.f32.mrf.mxu0
    %v1555 = vand.u32 %v147, 4294901760
    %v1556 = vsub.f32 %v147, %v1555
    %v1557 = vand.u32 %v1556, 4294901760
    %1558 = vmatmul.f32.gmra.mxu0 %v1557
    %v1559 = vpop.f32.mrf.mxu0
    %v1560 = vand.u32 %v150, 4294901760
    %v1561 = vsub.f32 %v150, %v1560
    %v1562 = vand.u32 %v1561, 4294901760
    %1563 = vmatmul.f32.gmra.mxu0 %v1562
    %v1564 = vpop.f32.mrf.mxu0
    %v1565 = vadd.f32 %v1525, %v1564
    %v1566 = vand.u32 %v153, 4294901760
    %v1567 = vsub.f32 %v153, %v1566
    %v1568 = vand.u32 %v1567, 4294901760
    %1569 = vmatmul.f32.gmra.mxu0 %v1568
    %v1570 = vpop.f32.mrf.mxu0
    %v1571 = vadd.f32 %v1530, %v1570
    %1572 = vdwg.mxu0
    %1573 = vmatpush.msra.mxu0 0.0
    %1574 = vmatpush.msra.mxu0 0.0
    %1575 = vmatpush.msra.mxu0 0.0
    %1576 = vmatpush.msra.mxu0 0.0
    %1577 = vmatpush.msra.mxu0 0.0
    %1578 = vmatpush.msra.mxu0 0.0
    %1579 = vmatpush.msra.mxu0 0.0
    %1580 = vmatpush.msra.mxu0 0.0
    %1581 = vmatpush.msra.mxu0 0.0
    %1582 = vmatpush.msra.mxu0 0.0
    %1583 = vmatpush.msra.mxu0 0.0
    %1584 = vmatpush.msra.mxu0 0.0
    %1585 = vmatpush.msra.mxu0 0.0
    %1586 = vmatpush.msra.mxu0 0.0
    %v1587 = vand.u32 %v139, 4294901760
    %v1588 = vsub.f32 %v139, %v1587
    %v1589 = vand.u32 %v1588, 4294901760
    %1590 = vmatpush.msra.mxu0 %v1589
    %v1591 = vand.u32 %v131, 4294901760
    %v1592 = vsub.f32 %v131, %v1591
    %v1593 = vand.u32 %v1592, 4294901760
    %1594 = vmatpush.msra.mxu0 %v1593
    %v1595 = vand.u32 %v144, 4294901760
    %1596 = vmatmul.f32.gmra.mxu0 %v1595
    %v1597 = vpop.f32.mrf.mxu0
    %v1598 = vand.u32 %v147, 4294901760
    %1599 = vmatmul.f32.gmra.mxu0 %v1598
    %v1600 = vpop.f32.mrf.mxu0
    %v1601 = vand.u32 %v150, 4294901760
    %1602 = vmatmul.f32.gmra.mxu0 %v1601
    %v1603 = vpop.f32.mrf.mxu0
    %v1604 = vadd.f32 %v1565, %v1603
    %v1605 = vand.u32 %v153, 4294901760
    %1606 = vmatmul.f32.gmra.mxu0 %v1605
    %v1607 = vpop.f32.mrf.mxu0
    %v1608 = vadd.f32 %v1571, %v1607
    %1609 = vdwg.mxu0
    %1610 = vmatpush.msra.mxu0 0.0
    %1611 = vmatpush.msra.mxu0 0.0
    %1612 = vmatpush.msra.mxu0 0.0
    %1613 = vmatpush.msra.mxu0 0.0
    %1614 = vmatpush.msra.mxu0 0.0
    %1615 = vmatpush.msra.mxu0 0.0
    %1616 = vmatpush.msra.mxu0 0.0
    %1617 = vmatpush.msra.mxu0 0.0
    %1618 = vmatpush.msra.mxu0 0.0
    %1619 = vmatpush.msra.mxu0 0.0
    %1620 = vmatpush.msra.mxu0 0.0
    %1621 = vmatpush.msra.mxu0 0.0
    %1622 = vmatpush.msra.mxu0 0.0
    %1623 = vmatpush.msra.mxu0 0.0
    %v1624 = vand.u32 %v139, 4294901760
    %1625 = vmatpush.msra.mxu0 %v1624
    %v1626 = vand.u32 %v131, 4294901760
    %1627 = vmatpush.msra.mxu0 %v1626
    %v1628 = vand.u32 %v144, 4294901760
    %1629 = vmatmul.f32.gmra.mxu0 %v1628
    %v1630 = vpop.f32.mrf.mxu0
    %v1631 = vand.u32 %v147, 4294901760
    %1632 = vmatmul.f32.gmra.mxu0 %v1631
    %v1633 = vpop.f32.mrf.mxu0
    %v1634 = vand.u32 %v150, 4294901760
    %1635 = vmatmul.f32.gmra.mxu0 %v1634
    %v1636 = vpop.f32.mrf.mxu0
    %v1637 = vadd.f32 %v1604, %v1636
    %v1638 = vand.u32 %v153, 4294901760
    %1639 = vmatmul.f32.gmra.mxu0 %v1638
    %v1640 = vpop.f32.mrf.mxu0
    %v1641 = vadd.f32 %v1608, %v1640
    %1642 = vdwg.mxu0
    %1643 = vmatpush.msra.mxu0 0.0
    %1644 = vmatpush.msra.mxu0 0.0
    %1645 = vmatpush.msra.mxu0 0.0
    %1646 = vmatpush.msra.mxu0 0.0
    %1647 = vmatpush.msra.mxu0 0.0
    %1648 = vmatpush.msra.mxu0 0.0
    %1649 = vmatpush.msra.mxu0 0.0
    %1650 = vmatpush.msra.mxu0 0.0
    %1651 = vmatpush.msra.mxu0 0.0
    %1652 = vmatpush.msra.mxu0 0.0
    %1653 = vmatpush.msra.mxu0 0.0
    %1654 = vmatpush.msra.mxu0 0.0
    %1655 = vmatpush.msra.mxu0 0.0
    %1656 = vmatpush.msra.mxu0 0.0
    %v1657 = vand.u32 %v140, 4294901760
    %1658 = vmatpush.msra.mxu0 %v1657
    %v1659 = vand.u32 %v132, 4294901760
    %1660 = vmatpush.msra.mxu0 %v1659
    %v1661 = vand.u32 %v144, 4294901760
    %v1662 = vsub.f32 %v144, %v1661
    %v1663 = vand.u32 %v1662, 4294901760
    %v1664 = vsub.f32 %v1662, %v1663
    %v1665 = vand.u32 %v1664, 4294901760
    %1666 = vmatmul.f32.gmra.mxu0 %v1665
    %v1667 = vpop.f32.mrf.mxu0
    %v1668 = vadd.f32 0.0, %v1667
    %v1669 = vand.u32 %v147, 4294901760
    %v1670 = vsub.f32 %v147, %v1669
    %v1671 = vand.u32 %v1670, 4294901760
    %v1672 = vsub.f32 %v1670, %v1671
    %v1673 = vand.u32 %v1672, 4294901760
    %1674 = vmatmul.f32.gmra.mxu0 %v1673
    %v1675 = vpop.f32.mrf.mxu0
    %v1676 = vadd.f32 0.0, %v1675
    %v1677 = vand.u32 %v150, 4294901760
    %v1678 = vsub.f32 %v150, %v1677
    %v1679 = vand.u32 %v1678, 4294901760
    %v1680 = vsub.f32 %v1678, %v1679
    %v1681 = vand.u32 %v1680, 4294901760
    %1682 = vmatmul.f32.gmra.mxu0 %v1681
    %v1683 = vpop.f32.mrf.mxu0
    %v1684 = vadd.f32 0.0, %v1683
    %v1685 = vand.u32 %v153, 4294901760
    %v1686 = vsub.f32 %v153, %v1685
    %v1687 = vand.u32 %v1686, 4294901760
    %v1688 = vsub.f32 %v1686, %v1687
    %v1689 = vand.u32 %v1688, 4294901760
    %1690 = vmatmul.f32.gmra.mxu0 %v1689
    %v1691 = vpop.f32.mrf.mxu0
    %v1692 = vadd.f32 0.0, %v1691
    %1693 = vdwg.mxu0
    %1694 = vmatpush.msra.mxu0 0.0
    %1695 = vmatpush.msra.mxu0 0.0
    %1696 = vmatpush.msra.mxu0 0.0
    %1697 = vmatpush.msra.mxu0 0.0
    %1698 = vmatpush.msra.mxu0 0.0
    %1699 = vmatpush.msra.mxu0 0.0
    %1700 = vmatpush.msra.mxu0 0.0
    %1701 = vmatpush.msra.mxu0 0.0
    %1702 = vmatpush.msra.mxu0 0.0
    %1703 = vmatpush.msra.mxu0 0.0
    %1704 = vmatpush.msra.mxu0 0.0
    %1705 = vmatpush.msra.mxu0 0.0
    %1706 = vmatpush.msra.mxu0 0.0
    %1707 = vmatpush.msra.mxu0 0.0
    %v1708 = vand.u32 %v140, 4294901760
    %v1709 = vsub.f32 %v140, %v1708
    %v1710 = vand.u32 %v1709, 4294901760
    %v1711 = vsub.f32 %v1709, %v1710
    %v1712 = vand.u32 %v1711, 4294901760
    %1713 = vmatpush.msra.mxu0 %v1712
    %v1714 = vand.u32 %v132, 4294901760
    %v1715 = vsub.f32 %v132, %v1714
    %v1716 = vand.u32 %v1715, 4294901760
    %v1717 = vsub.f32 %v1715, %v1716
    %v1718 = vand.u32 %v1717, 4294901760
    %1719 = vmatpush.msra.mxu0 %v1718
    %v1720 = vand.u32 %v144, 4294901760
    %1721 = vmatmul.f32.gmra.mxu0 %v1720
    %v1722 = vpop.f32.mrf.mxu0
    %v1723 = vadd.f32 %v1668, %v1722
    %v1724 = vand.u32 %v147, 4294901760
    %1725 = vmatmul.f32.gmra.mxu0 %v1724
    %v1726 = vpop.f32.mrf.mxu0
    %v1727 = vadd.f32 %v1676, %v1726
    %v1728 = vand.u32 %v150, 4294901760
    %1729 = vmatmul.f32.gmra.mxu0 %v1728
    %v1730 = vpop.f32.mrf.mxu0
    %v1731 = vadd.f32 %v1684, %v1730
    %v1732 = vand.u32 %v153, 4294901760
    %1733 = vmatmul.f32.gmra.mxu0 %v1732
    %v1734 = vpop.f32.mrf.mxu0
    %v1735 = vadd.f32 %v1692, %v1734
    %1736 = vdwg.mxu0
    %1737 = vmatpush.msra.mxu0 0.0
    %1738 = vmatpush.msra.mxu0 0.0
    %1739 = vmatpush.msra.mxu0 0.0
    %1740 = vmatpush.msra.mxu0 0.0
    %1741 = vmatpush.msra.mxu0 0.0
    %1742 = vmatpush.msra.mxu0 0.0
    %1743 = vmatpush.msra.mxu0 0.0
    %1744 = vmatpush.msra.mxu0 0.0
    %1745 = vmatpush.msra.mxu0 0.0
    %1746 = vmatpush.msra.mxu0 0.0
    %1747 = vmatpush.msra.mxu0 0.0
    %1748 = vmatpush.msra.mxu0 0.0
    %1749 = vmatpush.msra.mxu0 0.0
    %1750 = vmatpush.msra.mxu0 0.0
    %v1751 = vand.u32 %v140, 4294901760
    %v1752 = vsub.f32 %v140, %v1751
    %1753 = vmatpush.msra.mxu0 %v1752
    %v1754 = vand.u32 %v132, 4294901760
    %v1755 = vsub.f32 %v132, %v1754
    %1756 = vmatpush.msra.mxu0 %v1755
    %v1757 = vand.u32 %v144, 4294901760
    %v1758 = vsub.f32 %v144, %v1757
    %1759 = vmatmul.f32.gmra.mxu0 %v1758
    %v1760 = vpop.f32.mrf.mxu0
    %v1761 = vadd.f32 %v1723, %v1760
    %v1762 = vand.u32 %v147, 4294901760
    %v1763 = vsub.f32 %v147, %v1762
    %1764 = vmatmul.f32.gmra.mxu0 %v1763
    %v1765 = vpop.f32.mrf.mxu0
    %v1766 = vadd.f32 %v1727, %v1765
    %v1767 = vand.u32 %v150, 4294901760
    %v1768 = vsub.f32 %v150, %v1767
    %1769 = vmatmul.f32.gmra.mxu0 %v1768
    %v1770 = vpop.f32.mrf.mxu0
    %v1771 = vadd.f32 %v1731, %v1770
    %v1772 = vand.u32 %v153, 4294901760
    %v1773 = vsub.f32 %v153, %v1772
    %1774 = vmatmul.f32.gmra.mxu0 %v1773
    %v1775 = vpop.f32.mrf.mxu0
    %v1776 = vadd.f32 %v1735, %v1775
    %1777 = vdwg.mxu0
    %1778 = vmatpush.msra.mxu0 0.0
    %1779 = vmatpush.msra.mxu0 0.0
    %1780 = vmatpush.msra.mxu0 0.0
    %1781 = vmatpush.msra.mxu0 0.0
    %1782 = vmatpush.msra.mxu0 0.0
    %1783 = vmatpush.msra.mxu0 0.0
    %1784 = vmatpush.msra.mxu0 0.0
    %1785 = vmatpush.msra.mxu0 0.0
    %1786 = vmatpush.msra.mxu0 0.0
    %1787 = vmatpush.msra.mxu0 0.0
    %1788 = vmatpush.msra.mxu0 0.0
    %1789 = vmatpush.msra.mxu0 0.0
    %1790 = vmatpush.msra.mxu0 0.0
    %1791 = vmatpush.msra.mxu0 0.0
    %v1792 = vand.u32 %v140, 4294901760
    %1793 = vmatpush.msra.mxu0 %v1792
    %v1794 = vand.u32 %v132, 4294901760
    %1795 = vmatpush.msra.mxu0 %v1794
    %v1796 = vand.u32 %v144, 4294901760
    %v1797 = vsub.f32 %v144, %v1796
    %v1798 = vand.u32 %v1797, 4294901760
    %1799 = vmatmul.f32.gmra.mxu0 %v1798
    %v1800 = vpop.f32.mrf.mxu0
    %v1801 = vadd.f32 %v1761, %v1800
    %v1802 = vand.u32 %v147, 4294901760
    %v1803 = vsub.f32 %v147, %v1802
    %v1804 = vand.u32 %v1803, 4294901760
    %1805 = vmatmul.f32.gmra.mxu0 %v1804
    %v1806 = vpop.f32.mrf.mxu0
    %v1807 = vadd.f32 %v1766, %v1806
    %v1808 = vand.u32 %v150, 4294901760
    %v1809 = vsub.f32 %v150, %v1808
    %v1810 = vand.u32 %v1809, 4294901760
    %1811 = vmatmul.f32.gmra.mxu0 %v1810
    %v1812 = vpop.f32.mrf.mxu0
    %v1813 = vadd.f32 %v1771, %v1812
    %v1814 = vand.u32 %v153, 4294901760
    %v1815 = vsub.f32 %v153, %v1814
    %v1816 = vand.u32 %v1815, 4294901760
    %1817 = vmatmul.f32.gmra.mxu0 %v1816
    %v1818 = vpop.f32.mrf.mxu0
    %v1819 = vadd.f32 %v1776, %v1818
    %1820 = vdwg.mxu0
    %1821 = vmatpush.msra.mxu0 0.0
    %1822 = vmatpush.msra.mxu0 0.0
    %1823 = vmatpush.msra.mxu0 0.0
    %1824 = vmatpush.msra.mxu0 0.0
    %1825 = vmatpush.msra.mxu0 0.0
    %1826 = vmatpush.msra.mxu0 0.0
    %1827 = vmatpush.msra.mxu0 0.0
    %1828 = vmatpush.msra.mxu0 0.0
    %1829 = vmatpush.msra.mxu0 0.0
    %1830 = vmatpush.msra.mxu0 0.0
    %1831 = vmatpush.msra.mxu0 0.0
    %1832 = vmatpush.msra.mxu0 0.0
    %1833 = vmatpush.msra.mxu0 0.0
    %1834 = vmatpush.msra.mxu0 0.0
    %v1835 = vand.u32 %v140, 4294901760
    %v1836 = vsub.f32 %v140, %v1835
    %v1837 = vand.u32 %v1836, 4294901760
    %1838 = vmatpush.msra.mxu0 %v1837
    %v1839 = vand.u32 %v132, 4294901760
    %v1840 = vsub.f32 %v132, %v1839
    %v1841 = vand.u32 %v1840, 4294901760
    %1842 = vmatpush.msra.mxu0 %v1841
    %v1843 = vand.u32 %v144, 4294901760
    %1844 = vmatmul.f32.gmra.mxu0 %v1843
    %v1845 = vpop.f32.mrf.mxu0
    %v1846 = vadd.f32 %v1801, %v1845
    %v1847 = vand.u32 %v147, 4294901760
    %1848 = vmatmul.f32.gmra.mxu0 %v1847
    %v1849 = vpop.f32.mrf.mxu0
    %v1850 = vadd.f32 %v1807, %v1849
    %v1851 = vand.u32 %v150, 4294901760
    %1852 = vmatmul.f32.gmra.mxu0 %v1851
    %v1853 = vpop.f32.mrf.mxu0
    %v1854 = vadd.f32 %v1813, %v1853
    %v1855 = vand.u32 %v153, 4294901760
    %1856 = vmatmul.f32.gmra.mxu0 %v1855
    %v1857 = vpop.f32.mrf.mxu0
    %v1858 = vadd.f32 %v1819, %v1857
    %1859 = vdwg.mxu0
    %1860 = vmatpush.msra.mxu0 0.0
    %1861 = vmatpush.msra.mxu0 0.0
    %1862 = vmatpush.msra.mxu0 0.0
    %1863 = vmatpush.msra.mxu0 0.0
    %1864 = vmatpush.msra.mxu0 0.0
    %1865 = vmatpush.msra.mxu0 0.0
    %1866 = vmatpush.msra.mxu0 0.0
    %1867 = vmatpush.msra.mxu0 0.0
    %1868 = vmatpush.msra.mxu0 0.0
    %1869 = vmatpush.msra.mxu0 0.0
    %1870 = vmatpush.msra.mxu0 0.0
    %1871 = vmatpush.msra.mxu0 0.0
    %1872 = vmatpush.msra.mxu0 0.0
    %1873 = vmatpush.msra.mxu0 0.0
    %v1874 = vand.u32 %v140, 4294901760
    %1875 = vmatpush.msra.mxu0 %v1874
    %v1876 = vand.u32 %v132, 4294901760
    %1877 = vmatpush.msra.mxu0 %v1876
    %v1878 = vand.u32 %v144, 4294901760
    %1879 = vmatmul.f32.gmra.mxu0 %v1878
    %v1880 = vpop.f32.mrf.mxu0
    %v1881 = vadd.f32 %v1846, %v1880
    %v1882 = vand.u32 %v147, 4294901760
    %1883 = vmatmul.f32.gmra.mxu0 %v1882
    %v1884 = vpop.f32.mrf.mxu0
    %v1885 = vadd.f32 %v1850, %v1884
    %v1886 = vand.u32 %v150, 4294901760
    %1887 = vmatmul.f32.gmra.mxu0 %v1886
    %v1888 = vpop.f32.mrf.mxu0
    %v1889 = vadd.f32 %v1854, %v1888
    %v1890 = vand.u32 %v153, 4294901760
    %1891 = vmatmul.f32.gmra.mxu0 %v1890
    %v1892 = vpop.f32.mrf.mxu0
    %v1893 = vadd.f32 %v1858, %v1892
    %1894 = vdwg.mxu0
    %1895 = vmatpush.msra.mxu0 0.0
    %1896 = vmatpush.msra.mxu0 0.0
    %1897 = vmatpush.msra.mxu0 0.0
    %1898 = vmatpush.msra.mxu0 0.0
    %1899 = vmatpush.msra.mxu0 0.0
    %1900 = vmatpush.msra.mxu0 0.0
    %1901 = vmatpush.msra.mxu0 0.0
    %1902 = vmatpush.msra.mxu0 0.0
    %1903 = vmatpush.msra.mxu0 0.0
    %1904 = vmatpush.msra.mxu0 0.0
    %1905 = vmatpush.msra.mxu0 0.0
    %1906 = vmatpush.msra.mxu0 0.0
    %1907 = vmatpush.msra.mxu0 0.0
    %1908 = vmatpush.msra.mxu0 0.0
    %v1909 = vand.u32 %v141, 4294901760
    %1910 = vmatpush.msra.mxu0 %v1909
    %v1911 = vand.u32 %v133, 4294901760
    %1912 = vmatpush.msra.mxu0 %v1911
    %v1913 = vand.u32 %v144, 4294901760
    %v1914 = vsub.f32 %v144, %v1913
    %v1915 = vand.u32 %v1914, 4294901760
    %v1916 = vsub.f32 %v1914, %v1915
    %v1917 = vand.u32 %v1916, 4294901760
    %1918 = vmatmul.f32.gmra.mxu0 %v1917
    %v1919 = vpop.f32.mrf.mxu0
    %v1920 = vadd.f32 0.0, %v1919
    %v1921 = vand.u32 %v147, 4294901760
    %v1922 = vsub.f32 %v147, %v1921
    %v1923 = vand.u32 %v1922, 4294901760
    %v1924 = vsub.f32 %v1922, %v1923
    %v1925 = vand.u32 %v1924, 4294901760
    %1926 = vmatmul.f32.gmra.mxu0 %v1925
    %v1927 = vpop.f32.mrf.mxu0
    %v1928 = vadd.f32 0.0, %v1927
    %v1929 = vand.u32 %v150, 4294901760
    %v1930 = vsub.f32 %v150, %v1929
    %v1931 = vand.u32 %v1930, 4294901760
    %v1932 = vsub.f32 %v1930, %v1931
    %v1933 = vand.u32 %v1932, 4294901760
    %1934 = vmatmul.f32.gmra.mxu0 %v1933
    %v1935 = vpop.f32.mrf.mxu0
    %v1936 = vadd.f32 0.0, %v1935
    %v1937 = vand.u32 %v153, 4294901760
    %v1938 = vsub.f32 %v153, %v1937
    %v1939 = vand.u32 %v1938, 4294901760
    %v1940 = vsub.f32 %v1938, %v1939
    %v1941 = vand.u32 %v1940, 4294901760
    %1942 = vmatmul.f32.gmra.mxu0 %v1941
    %v1943 = vpop.f32.mrf.mxu0
    %v1944 = vadd.f32 0.0, %v1943
    %1945 = vdwg.mxu0
    %1946 = vmatpush.msra.mxu0 0.0
    %1947 = vmatpush.msra.mxu0 0.0
    %1948 = vmatpush.msra.mxu0 0.0
    %1949 = vmatpush.msra.mxu0 0.0
    %1950 = vmatpush.msra.mxu0 0.0
    %1951 = vmatpush.msra.mxu0 0.0
    %1952 = vmatpush.msra.mxu0 0.0
    %1953 = vmatpush.msra.mxu0 0.0
    %1954 = vmatpush.msra.mxu0 0.0
    %1955 = vmatpush.msra.mxu0 0.0
    %1956 = vmatpush.msra.mxu0 0.0
    %1957 = vmatpush.msra.mxu0 0.0
    %1958 = vmatpush.msra.mxu0 0.0
    %1959 = vmatpush.msra.mxu0 0.0
    %v1960 = vand.u32 %v141, 4294901760
    %v1961 = vsub.f32 %v141, %v1960
    %v1962 = vand.u32 %v1961, 4294901760
    %v1963 = vsub.f32 %v1961, %v1962
    %v1964 = vand.u32 %v1963, 4294901760
    %1965 = vmatpush.msra.mxu0 %v1964
    %v1966 = vand.u32 %v133, 4294901760
    %v1967 = vsub.f32 %v133, %v1966
    %v1968 = vand.u32 %v1967, 4294901760
    %v1969 = vsub.f32 %v1967, %v1968
    %v1970 = vand.u32 %v1969, 4294901760
    %1971 = vmatpush.msra.mxu0 %v1970
    %v1972 = vand.u32 %v144, 4294901760
    %1973 = vmatmul.f32.gmra.mxu0 %v1972
    %v1974 = vpop.f32.mrf.mxu0
    %v1975 = vadd.f32 %v1920, %v1974
    %v1976 = vand.u32 %v147, 4294901760
    %1977 = vmatmul.f32.gmra.mxu0 %v1976
    %v1978 = vpop.f32.mrf.mxu0
    %v1979 = vadd.f32 %v1928, %v1978
    %v1980 = vand.u32 %v150, 4294901760
    %1981 = vmatmul.f32.gmra.mxu0 %v1980
    %v1982 = vpop.f32.mrf.mxu0
    %v1983 = vadd.f32 %v1936, %v1982
    %v1984 = vand.u32 %v153, 4294901760
    %1985 = vmatmul.f32.gmra.mxu0 %v1984
    %v1986 = vpop.f32.mrf.mxu0
    %v1987 = vadd.f32 %v1944, %v1986
    %1988 = vdwg.mxu0
    %1989 = vmatpush.msra.mxu0 0.0
    %1990 = vmatpush.msra.mxu0 0.0
    %1991 = vmatpush.msra.mxu0 0.0
    %1992 = vmatpush.msra.mxu0 0.0
    %1993 = vmatpush.msra.mxu0 0.0
    %1994 = vmatpush.msra.mxu0 0.0
    %1995 = vmatpush.msra.mxu0 0.0
    %1996 = vmatpush.msra.mxu0 0.0
    %1997 = vmatpush.msra.mxu0 0.0
    %1998 = vmatpush.msra.mxu0 0.0
    %1999 = vmatpush.msra.mxu0 0.0
    %2000 = vmatpush.msra.mxu0 0.0
    %2001 = vmatpush.msra.mxu0 0.0
    %2002 = vmatpush.msra.mxu0 0.0
    %v2003 = vand.u32 %v141, 4294901760
    %v2004 = vsub.f32 %v141, %v2003
    %2005 = vmatpush.msra.mxu0 %v2004
    %v2006 = vand.u32 %v133, 4294901760
    %v2007 = vsub.f32 %v133, %v2006
    %2008 = vmatpush.msra.mxu0 %v2007
    %v2009 = vand.u32 %v144, 4294901760
    %v2010 = vsub.f32 %v144, %v2009
    %2011 = vmatmul.f32.gmra.mxu0 %v2010
    %v2012 = vpop.f32.mrf.mxu0
    %v2013 = vadd.f32 %v1975, %v2012
    %v2014 = vand.u32 %v147, 4294901760
    %v2015 = vsub.f32 %v147, %v2014
    %2016 = vmatmul.f32.gmra.mxu0 %v2015
    %v2017 = vpop.f32.mrf.mxu0
    %v2018 = vadd.f32 %v1979, %v2017
    %v2019 = vand.u32 %v150, 4294901760
    %v2020 = vsub.f32 %v150, %v2019
    %2021 = vmatmul.f32.gmra.mxu0 %v2020
    %v2022 = vpop.f32.mrf.mxu0
    %v2023 = vadd.f32 %v1983, %v2022
    %v2024 = vand.u32 %v153, 4294901760
    %v2025 = vsub.f32 %v153, %v2024
    %2026 = vmatmul.f32.gmra.mxu0 %v2025
    %v2027 = vpop.f32.mrf.mxu0
    %v2028 = vadd.f32 %v1987, %v2027
    %2029 = vdwg.mxu0
    %2030 = vmatpush.msra.mxu0 0.0
    %2031 = vmatpush.msra.mxu0 0.0
    %2032 = vmatpush.msra.mxu0 0.0
    %2033 = vmatpush.msra.mxu0 0.0
    %2034 = vmatpush.msra.mxu0 0.0
    %2035 = vmatpush.msra.mxu0 0.0
    %2036 = vmatpush.msra.mxu0 0.0
    %2037 = vmatpush.msra.mxu0 0.0
    %2038 = vmatpush.msra.mxu0 0.0
    %2039 = vmatpush.msra.mxu0 0.0
    %2040 = vmatpush.msra.mxu0 0.0
    %2041 = vmatpush.msra.mxu0 0.0
    %2042 = vmatpush.msra.mxu0 0.0
    %2043 = vmatpush.msra.mxu0 0.0
    %v2044 = vand.u32 %v141, 4294901760
    %2045 = vmatpush.msra.mxu0 %v2044
    %v2046 = vand.u32 %v133, 4294901760
    %2047 = vmatpush.msra.mxu0 %v2046
    %v2048 = vand.u32 %v144, 4294901760
    %v2049 = vsub.f32 %v144, %v2048
    %v2050 = vand.u32 %v2049, 4294901760
    %2051 = vmatmul.f32.gmra.mxu0 %v2050
    %v2052 = vpop.f32.mrf.mxu0
    %v2053 = vadd.f32 %v2013, %v2052
    %v2054 = vand.u32 %v147, 4294901760
    %v2055 = vsub.f32 %v147, %v2054
    %v2056 = vand.u32 %v2055, 4294901760
    %2057 = vmatmul.f32.gmra.mxu0 %v2056
    %v2058 = vpop.f32.mrf.mxu0
    %v2059 = vadd.f32 %v2018, %v2058
    %v2060 = vand.u32 %v150, 4294901760
    %v2061 = vsub.f32 %v150, %v2060
    %v2062 = vand.u32 %v2061, 4294901760
    %2063 = vmatmul.f32.gmra.mxu0 %v2062
    %v2064 = vpop.f32.mrf.mxu0
    %v2065 = vadd.f32 %v2023, %v2064
    %v2066 = vand.u32 %v153, 4294901760
    %v2067 = vsub.f32 %v153, %v2066
    %v2068 = vand.u32 %v2067, 4294901760
    %2069 = vmatmul.f32.gmra.mxu0 %v2068
    %v2070 = vpop.f32.mrf.mxu0
    %v2071 = vadd.f32 %v2028, %v2070
    %2072 = vdwg.mxu0
    %2073 = vmatpush.msra.mxu0 0.0
    %2074 = vmatpush.msra.mxu0 0.0
    %2075 = vmatpush.msra.mxu0 0.0
    %2076 = vmatpush.msra.mxu0 0.0
    %2077 = vmatpush.msra.mxu0 0.0
    %2078 = vmatpush.msra.mxu0 0.0
    %2079 = vmatpush.msra.mxu0 0.0
    %2080 = vmatpush.msra.mxu0 0.0
    %2081 = vmatpush.msra.mxu0 0.0
    %2082 = vmatpush.msra.mxu0 0.0
    %2083 = vmatpush.msra.mxu0 0.0
    %2084 = vmatpush.msra.mxu0 0.0
    %2085 = vmatpush.msra.mxu0 0.0
    %2086 = vmatpush.msra.mxu0 0.0
    %v2087 = vand.u32 %v141, 4294901760
    %v2088 = vsub.f32 %v141, %v2087
    %v2089 = vand.u32 %v2088, 4294901760
    %2090 = vmatpush.msra.mxu0 %v2089
    %v2091 = vand.u32 %v133, 4294901760
    %v2092 = vsub.f32 %v133, %v2091
    %v2093 = vand.u32 %v2092, 4294901760
    %2094 = vmatpush.msra.mxu0 %v2093
    %v2095 = vand.u32 %v144, 4294901760
    %2096 = vmatmul.f32.gmra.mxu0 %v2095
    %v2097 = vpop.f32.mrf.mxu0
    %v2098 = vadd.f32 %v2053, %v2097
    %v2099 = vand.u32 %v147, 4294901760
    %2100 = vmatmul.f32.gmra.mxu0 %v2099
    %v2101 = vpop.f32.mrf.mxu0
    %v2102 = vadd.f32 %v2059, %v2101
    %v2103 = vand.u32 %v150, 4294901760
    %2104 = vmatmul.f32.gmra.mxu0 %v2103
    %v2105 = vpop.f32.mrf.mxu0
    %v2106 = vadd.f32 %v2065, %v2105
    %v2107 = vand.u32 %v153, 4294901760
    %2108 = vmatmul.f32.gmra.mxu0 %v2107
    %v2109 = vpop.f32.mrf.mxu0
    %v2110 = vadd.f32 %v2071, %v2109
    %2111 = vdwg.mxu0
    %2112 = vmatpush.msra.mxu0 0.0
    %2113 = vmatpush.msra.mxu0 0.0
    %2114 = vmatpush.msra.mxu0 0.0
    %2115 = vmatpush.msra.mxu0 0.0
    %2116 = vmatpush.msra.mxu0 0.0
    %2117 = vmatpush.msra.mxu0 0.0
    %2118 = vmatpush.msra.mxu0 0.0
    %2119 = vmatpush.msra.mxu0 0.0
    %2120 = vmatpush.msra.mxu0 0.0
    %2121 = vmatpush.msra.mxu0 0.0
    %2122 = vmatpush.msra.mxu0 0.0
    %2123 = vmatpush.msra.mxu0 0.0
    %2124 = vmatpush.msra.mxu0 0.0
    %2125 = vmatpush.msra.mxu0 0.0
    %v2126 = vand.u32 %v141, 4294901760
    %2127 = vmatpush.msra.mxu0 %v2126
    %v2128 = vand.u32 %v133, 4294901760
    %2129 = vmatpush.msra.mxu0 %v2128
    %v2130 = vand.u32 %v144, 4294901760
    %2131 = vmatmul.f32.gmra.mxu0 %v2130
    %v2132 = vpop.f32.mrf.mxu0
    %v2133 = vadd.f32 %v2098, %v2132
    %v2134 = vand.u32 %v147, 4294901760
    %2135 = vmatmul.f32.gmra.mxu0 %v2134
    %v2136 = vpop.f32.mrf.mxu0
    %v2137 = vadd.f32 %v2102, %v2136
    %v2138 = vand.u32 %v150, 4294901760
    %2139 = vmatmul.f32.gmra.mxu0 %v2138
    %v2140 = vpop.f32.mrf.mxu0
    %v2141 = vadd.f32 %v2106, %v2140
    %v2142 = vand.u32 %v153, 4294901760
    %2143 = vmatmul.f32.gmra.mxu0 %v2142
    %v2144 = vpop.f32.mrf.mxu0
    %v2145 = vadd.f32 %v2110, %v2144
    %2146 = vdwg.mxu0
    %v2147 = vmul.f32 %v393, %v70
    %v2148 = vmul.f32 %v645, %v71
    %v2149 = vmul.f32 %v1137, %v73
    %v2150 = vmul.f32 %v1389, %v74
    %v2151 = vmul.f32 %v1881, %v76
    %v2152 = vmul.f32 %v2133, %v77
    %v2153 = vmul.f32 %v397, %v78
    %v2154 = vmul.f32 %v649, %v79
    %v2155 = vmul.f32 %v1141, %v81
    %v2156 = vmul.f32 %v1393, %v82
    %v2157 = vmul.f32 %v1885, %v84
    %v2158 = vmul.f32 %v2137, %v85
    %v2159 = vadd.f32 %v2147, %v2153
    %v2160 = vrot.slane %v2159, 4
    %v2161 = vadd.f32 %v2159, %v2160
    %v2162 = vrot.slane %v2161, 2
    %v2163 = vadd.f32 %v2161, %v2162
    %v2164 = vrot.slane %v2163, 1
    %v2165 = vadd.f32 %v2163, %v2164
    %v2166 = vadd.f32 %v2148, %v2154
    %v2167 = vrot.slane %v2166, 4
    %v2168 = vadd.f32 %v2166, %v2167
    %v2169 = vrot.slane %v2168, 2
    %v2170 = vadd.f32 %v2168, %v2169
    %v2171 = vrot.slane %v2170, 1
    %v2172 = vadd.f32 %v2170, %v2171
    %v2173 = vadd.f32 %v2149, %v2155
    %v2174 = vrot.slane %v2173, 4
    %v2175 = vadd.f32 %v2173, %v2174
    %v2176 = vrot.slane %v2175, 2
    %v2177 = vadd.f32 %v2175, %v2176
    %v2178 = vrot.slane %v2177, 1
    %v2179 = vadd.f32 %v2177, %v2178
    %v2180 = vadd.f32 %v2150, %v2156
    %v2181 = vrot.slane %v2180, 4
    %v2182 = vadd.f32 %v2180, %v2181
    %v2183 = vrot.slane %v2182, 2
    %v2184 = vadd.f32 %v2182, %v2183
    %v2185 = vrot.slane %v2184, 1
    %v2186 = vadd.f32 %v2184, %v2185
    %v2187 = vadd.f32 %v2151, %v2157
    %v2188 = vrot.slane %v2187, 4
    %v2189 = vadd.f32 %v2187, %v2188
    %v2190 = vrot.slane %v2189, 2
    %v2191 = vadd.f32 %v2189, %v2190
    %v2192 = vrot.slane %v2191, 1
    %v2193 = vadd.f32 %v2191, %v2192
    %v2194 = vadd.f32 %v2152, %v2158
    %v2195 = vrot.slane %v2194, 4
    %v2196 = vadd.f32 %v2194, %v2195
    %v2197 = vrot.slane %v2196, 2
    %v2198 = vadd.f32 %v2196, %v2197
    %v2199 = vrot.slane %v2198, 1
    %v2200 = vadd.f32 %v2198, %v2199
    %v2201 = vmul.f32 %v401, %v70
    %v2202 = vmul.f32 %v653, %v71
    %v2203 = vmul.f32 %v893, %v72
    %v2204 = vmul.f32 %v1145, %v73
    %v2205 = vmul.f32 %v1397, %v74
    %v2206 = vmul.f32 %v1637, %v75
    %v2207 = vmul.f32 %v1889, %v76
    %v2208 = vmul.f32 %v2141, %v77
    %v2209 = vmul.f32 %v405, %v78
    %v2210 = vmul.f32 %v657, %v79
    %v2211 = vmul.f32 %v897, %v80
    %v2212 = vmul.f32 %v1149, %v81
    %v2213 = vmul.f32 %v1401, %v82
    %v2214 = vmul.f32 %v1641, %v83
    %v2215 = vmul.f32 %v1893, %v84
    %v2216 = vmul.f32 %v2145, %v85
    %v2217 = vadd.f32 %v2201, %v2209
    %v2218 = vrot.slane %v2217, 4
    %v2219 = vadd.f32 %v2217, %v2218
    %v2220 = vrot.slane %v2219, 2
    %v2221 = vadd.f32 %v2219, %v2220
    %v2222 = vrot.slane %v2221, 1
    %v2223 = vadd.f32 %v2221, %v2222
    %v2224 = vadd.f32 %v2202, %v2210
    %v2225 = vrot.slane %v2224, 4
    %v2226 = vadd.f32 %v2224, %v2225
    %v2227 = vrot.slane %v2226, 2
    %v2228 = vadd.f32 %v2226, %v2227
    %v2229 = vrot.slane %v2228, 1
    %v2230 = vadd.f32 %v2228, %v2229
    %v2231 = vadd.f32 %v2203, %v2211
    %v2232 = vrot.slane %v2231, 4
    %v2233 = vadd.f32 %v2231, %v2232
    %v2234 = vrot.slane %v2233, 2
    %v2235 = vadd.f32 %v2233, %v2234
    %v2236 = vrot.slane %v2235, 1
    %v2237 = vadd.f32 %v2235, %v2236
    %v2238 = vadd.f32 %v2204, %v2212
    %v2239 = vrot.slane %v2238, 4
    %v2240 = vadd.f32 %v2238, %v2239
    %v2241 = vrot.slane %v2240, 2
    %v2242 = vadd.f32 %v2240, %v2241
    %v2243 = vrot.slane %v2242, 1
    %v2244 = vadd.f32 %v2242, %v2243
    %v2245 = vadd.f32 %v2205, %v2213
    %v2246 = vrot.slane %v2245, 4
    %v2247 = vadd.f32 %v2245, %v2246
    %v2248 = vrot.slane %v2247, 2
    %v2249 = vadd.f32 %v2247, %v2248
    %v2250 = vrot.slane %v2249, 1
    %v2251 = vadd.f32 %v2249, %v2250
    %v2252 = vadd.f32 %v2206, %v2214
    %v2253 = vrot.slane %v2252, 4
    %v2254 = vadd.f32 %v2252, %v2253
    %v2255 = vrot.slane %v2254, 2
    %v2256 = vadd.f32 %v2254, %v2255
    %v2257 = vrot.slane %v2256, 1
    %v2258 = vadd.f32 %v2256, %v2257
    %v2259 = vadd.f32 %v2207, %v2215
    %v2260 = vrot.slane %v2259, 4
    %v2261 = vadd.f32 %v2259, %v2260
    %v2262 = vrot.slane %v2261, 2
    %v2263 = vadd.f32 %v2261, %v2262
    %v2264 = vrot.slane %v2263, 1
    %v2265 = vadd.f32 %v2263, %v2264
    %v2266 = vadd.f32 %v2208, %v2216
    %v2267 = vrot.slane %v2266, 4
    %v2268 = vadd.f32 %v2266, %v2267
    %v2269 = vrot.slane %v2268, 2
    %v2270 = vadd.f32 %v2268, %v2269
    %v2271 = vrot.slane %v2270, 1
    %v2272 = vadd.f32 %v2270, %v2271
    %v2273 = vmin.f32 %v2165, %v2223
    %v2274 = vsel %vm26, %v2273, %v2165
    %v2275 = vsel %vm26, 1, 0
    %v2276 = vrot.slane %v2275, 1
    %vm2277 = vcmp.ne.s32.totalorder %v2276, 0
    %v2278 = vsel %vm2277, %v2230, %v2172
    %v2279 = vsub.f32 %v2278, %v2274
    %v2280 = vand.u32 2147483647, %v2279
    %v2281 = vadd.f32 %v2280, 0.0
    %v2282 = vmax.f32 %v2179, %v2244
    %v2283 = vrot.slane %v2275, 3
    %vm2284 = vcmp.ne.s32.totalorder %v2283, 0
    %v2285 = vsel %vm2284, %v2244, %v2282
    %v2286 = vsub.f32 %v2285, %v2237
    %v2287 = vand.u32 2147483647, %v2286
    %v2288 = vadd.f32 %v2281, %v2287
    %v2289 = vmin.f32 %v2186, %v2251
    %v2290 = vrot.slane %v2275, 4
    %vm2291 = vcmp.ne.s32.totalorder %v2290, 0
    %v2292 = vsel %vm2291, %v2289, %v2251
    %v2293 = vsub.f32 %v2258, %v2292
    %v2294 = vand.u32 2147483647, %v2293
    %v2295 = vadd.f32 %v2288, %v2294
    %v2296 = vrot.slane %v2275, 6
    %vm2297 = vcmp.ne.s32.totalorder %v2296, 0
    %v2298 = vsel %vm2297, %v2193, %v2265
    %v2299 = vmax.f32 %v2200, %v2272
    %v2300 = vrot.slane %v2275, 7
    %vm2301 = vcmp.ne.s32.totalorder %v2300, 0
    %v2302 = vsel %vm2301, %v2200, %v2299
    %v2303 = vsub.f32 %v2302, %v2298
    %v2304 = vand.u32 2147483647, %v2303
    %v2305 = vadd.f32 %v2295, %v2304
    %2306 = vst [vmem:[#allocation2] sm:$0x1] %v2305
    // Predicated region
    $region10: #{tpu_custom_call.1} parent=1 // pred_check
      _
    $region11: #{tpu_custom_call.1} parent=1 // pred_check_branch
      %2308 = sbr.rel (0) target = $region13
    $region12: #{tpu_custom_call.1} parent=1 // pred_region
      %2310 = vsyncadd [#allocation3], 0
      %s2312 = sshll.u32 [#allocation2], 4
      %s2313 = int_to_ptr.vmem [resolvable:$true] %s2312
      %s2314 = sshll.u32 %s2, 4
      %s2315 = int_to_ptr.hbm [resolvable:$true] %s2314
      %2317 = dma.vmem_to_hbm [thread:$0]  %s2313, 16, %s2315, [#allocation3]
    $region13: #{tpu_custom_call.1} parent=1 // pred_fallthru
      _
    // Predicated region
    $region14: #{tpu_custom_call.1} parent=1 // pred_check
      _
    $region15: #{tpu_custom_call.1} parent=1 // pred_check_branch
      %2319 = sbr.rel (0) target = $region17
    $region16: #{tpu_custom_call.1} parent=1 // pred_region
      %2321 = dma.done [#allocation3], 16
    $region17: #{tpu_custom_call.1} parent=1 // pred_fallthru
      _
    %2322 = vsyncpa [#allocation3], 1

</llo_original>
